<compile_context>
chip_gen: v7x
topology: tpu7x:2x2x1
jax: 0.10.0
libtpu: 0.0.40
codegen_flags: <defaults>
</compile_context>

<pallas_src>
import jax
import jax.numpy as jnp
from jax.experimental import pallas as pl
from jax.experimental.pallas import tpu as pltpu

_HEAD = 8  # zero-padded width of the 5-wide head (full-dim output block)


def _cdiv(a, b):
    return (a + b - 1) // b


def _round_up(n, m):
    return ((n + m - 1) // m) * m


def _device_kind():
    try:
        return jax.devices()[0].device_kind.lower()
    except Exception:
        return ""


def _num_tensorcores():
    kind = _device_kind()
    # v4/v5p (megacore) and v7x expose 2 TensorCores behind one grid;
    # v2/v3/v5e/v6e are single-TC.
    return 2 if any(t in kind for t in ("v4", "v5p", "v7")) else 1


def _default_epilogue_dtype():
    kind = _device_kind()
    # v6e/v7x have bf16 VPU ALUs -> bf16 bias+ReLU epilogue halves VALU work
    # and inter-layer VMEM traffic.  v5e (and older) keep the f32 epilogue.
    return jnp.bfloat16 if any(t in kind for t in ("v6", "v7")) else jnp.float32


def _make_net_kernel(epilogue_dtype):
    """Entire Net forward for one batch tile; all matmuls on the MXU in bf16."""

    def net_kernel(x_ref,
                   w1, b1, w2, b2, w3, b3, w4, b4, w5, b5, wf, bfc,
                   o_ref):
        def linear(h, w_ref, b_ref):
            lhs = h if h.dtype == jnp.bfloat16 else h.astype(jnp.bfloat16)
            acc = jnp.dot(lhs, w_ref[...], preferred_element_type=epilogue_dtype)
            return acc + b_ref[...]

        def block(h):
            h = jnp.maximum(linear(h, w1, b1), 0.0)
            h = jnp.maximum(linear(h, w2, b2), 0.0)
            h = jnp.maximum(linear(h, w3, b3), 0.0)
            h = jnp.maximum(linear(h, w4, b4), 0.0)
            return linear(h, w5, b5)      # (tile_b, _HEAD); cols 5.. exactly 0

        h = block(x_ref[...])             # (tile_b, _HEAD)
        h = linear(h, wf, bfc)            # (tile_b, 36)
        h = block(h)                      # (tile_b, _HEAD)
        o_ref[...] = h.astype(o_ref.dtype)

    return net_kernel


def prepare_params(params, *, epilogue_dtype=None):
    """One-time cast/pad of the weights (hoisted out of the per-call path)."""
    if epilogue_dtype is None:
        epilogue_dtype = _default_epilogue_dtype()
    bf16 = jnp.bfloat16

    def bias2d(b):
        return jnp.asarray(b).reshape(1, -1)   # accept 1-D PyTorch-style biases

    w1 = jnp.asarray(params["w1"]).astype(bf16)
    b1 = bias2d(params["b1"]).astype(epilogue_dtype)
    w2 = jnp.asarray(params["w2"]).astype(bf16)
    b2 = bias2d(params["b2"]).astype(epilogue_dtype)
    w3 = jnp.asarray(params["w3"]).astype(bf16)
    b3 = bias2d(params["b3"]).astype(epilogue_dtype)
    w4 = jnp.asarray(params["w4"]).astype(bf16)
    b4 = bias2d(params["b4"]).astype(epilogue_dtype)
    # Zero-pad the 5-wide head to _HEAD lanes: exact math (padded cols stay 0
    # through the fc contraction), and the output store shrinks to 8 lanes.
    w5 = jnp.pad(jnp.asarray(params["w5"]), ((0, 0), (0, _HEAD - 5))).astype(bf16)
    b5 = jnp.pad(bias2d(params["b5"]), ((0, 0), (0, _HEAD - 5))).astype(epilogue_dtype)
    wf = jnp.pad(jnp.asarray(params["wf"]), ((0, _HEAD - 5), (0, 0))).astype(bf16)
    bfc = bias2d(params["bf"]).astype(epilogue_dtype)

    return {
        "weights": (w1, b1, w2, b2, w3, b3, w4, b4, w5, b5, wf, bfc),
        "epilogue_dtype": epilogue_dtype,
    }


def _choose_tile_b(B, n_cores, max_tile):
    if n_cores >= 2:
        # >=2 grid steps so both TensorCores are busy, and an EVEN step count
        # so the cores finish together; tiles capped at max_tile.
        n_steps = max(2, 2 * _cdiv(B, 2 * max_tile))
        tile = _round_up(_cdiv(B, n_steps), 16)
    else:
        # Single-TC chip: one big tile when it fits (no per-step overhead),
        # clamped to the batch so small batches don't pad up to max_tile.
        tile = min(_round_up(B, 16), max_tile)
    return max(tile, 16)


def net_forward(x, prepared, *, max_tile=1024):
    """x: (B, 36) float32; prepared: output of prepare_params()."""
    weights = prepared["weights"]
    B, F = x.shape
    assert F == 36

    tile_b = _choose_tile_b(B, _num_tensorcores(), max_tile)
    B_pad = _round_up(B, tile_b)

    x_p = x.astype(jnp.bfloat16)           # halves input DMA bytes
    if B_pad != B:
        x_p = jnp.pad(x_p, ((0, B_pad - B), (0, 0)))

    grid = (B_pad // tile_b,)
    in_specs = [pl.BlockSpec((tile_b, 36), lambda i: (i, 0))]
    in_specs += [pl.BlockSpec(a.shape, lambda i: (0, 0)) for a in weights]
    out_spec = pl.BlockSpec((tile_b, _HEAD), lambda i: (i, 0))

    # Advisory cost estimate: two block applications + the head->36 fc per row.
    block_macs = 36 * 300 + 300 * 200 + 200 * 100 + 100 * 50 + 50 * _HEAD
    flops = 2 * B_pad * (2 * block_macs + _HEAD * 36)
    bytes_accessed = (int(x_p.size) * x_p.dtype.itemsize
                      + sum(int(a.size) * a.dtype.itemsize for a in weights)
                      + B_pad * _HEAD * 4)
    cost = pl.CostEstimate(flops=int(flops), transcendentals=0,
                           bytes_accessed=int(bytes_accessed))

    out = pl.pallas_call(
        _make_net_kernel(prepared["epilogue_dtype"]),
        out_shape=jax.ShapeDtypeStruct((B_pad, _HEAD), jnp.float32),
        grid_spec=pltpu.PrefetchScalarGridSpec(
            num_scalar_prefetch=0,
            grid=grid,
            in_specs=in_specs,
            out_specs=out_spec,
        ),
        compiler_params=pltpu.CompilerParams(
            dimension_semantics=("parallel",),
        ),
        cost_estimate=cost,
    )(x_p, *weights)

    return out[:B, :5]


def init_params(key):
    """Deterministic init mimicking PyTorch's default U(-1/sqrt(fan_in), +)."""
    sizes = [(36, 300), (300, 200), (200, 100), (100, 50), (50, 5), (5, 36)]
    names = ["1", "2", "3", "4", "5", "f"]
    params = {}
    for (fan_in, fan_out), n in zip(sizes, names):
        key, kw, kb = jax.random.split(key, 3)
        bound = 1.0 / (fan_in ** 0.5)
        # Stored already transposed: (in_features, out_features).
        params["w" + n] = jax.random.uniform(
            kw, (fan_in, fan_out), jnp.float32, -bound, bound)
        params["b" + n] = jax.random.uniform(
            kb, (1, fan_out), jnp.float32, -bound, bound)
    return params


def net_reference(x, p):
    """Pure-JAX f32 reference for correctness checking."""
    def block(h):
        h = jnp.maximum(h @ p["w1"] + p["b1"], 0.0)
        h = jnp.maximum(h @ p["w2"] + p["b2"], 0.0)
        h = jnp.maximum(h @ p["w3"] + p["b3"], 0.0)
        h = jnp.maximum(h @ p["w4"] + p["b4"], 0.0)
        return h @ p["w5"] + p["b5"]
    h = block(x)
    h = h @ p["wf"] + p["bf"]
    return block(h)


if __name__ == "__main__":
    key = jax.random.PRNGKey(0)
    kx, kp = jax.random.split(key)
    params = init_params(kp)
    prepared = prepare_params(params)   # one-time cast/pad, reused across calls

    for B in (2, 64, 200):  # tiny, small, and ragged batch sizes
        x = jax.random.normal(jax.random.fold_in(kx, B), (B, 36), jnp.float32)
        out = jax.block_until_ready(net_forward(x, prepared))
        ref = net_reference(x, params)
        assert out.shape == (B, 5)
        # bf16 MXU operands (and bf16 epilogue on v6e/v7x) vs f32 reference.
        assert jnp.allclose(out, ref, atol=1e-1, rtol=1e-1), "mismatch vs reference"

    print("KERNEL_OK")
</pallas_src>

<mosaic_0001>
module attributes {stable_mosaic.version = 11 : i64} {
  func.func @net_kernel(%arg0: i32, %arg1: memref<16x36xbf16, #tpu.memory_space<vmem>>, %arg2: memref<36x300xbf16, #tpu.memory_space<vmem>>, %arg3: memref<1x300xf32, #tpu.memory_space<vmem>>, %arg4: memref<300x200xbf16, #tpu.memory_space<vmem>>, %arg5: memref<1x200xf32, #tpu.memory_space<vmem>>, %arg6: memref<200x100xbf16, #tpu.memory_space<vmem>>, %arg7: memref<1x100xf32, #tpu.memory_space<vmem>>, %arg8: memref<100x50xbf16, #tpu.memory_space<vmem>>, %arg9: memref<1x50xf32, #tpu.memory_space<vmem>>, %arg10: memref<50x8xbf16, #tpu.memory_space<vmem>>, %arg11: memref<1x8xf32, #tpu.memory_space<vmem>>, %arg12: memref<8x36xbf16, #tpu.memory_space<vmem>>, %arg13: memref<1x36xf32, #tpu.memory_space<vmem>>, %arg14: memref<16x8xf32, #tpu.memory_space<vmem>>) attributes {dimension_semantics = [#tpu.dimension_semantics<parallel>], iteration_bounds = array<i64: 1>, scalar_prefetch = 0 : i64, scratch_operands = 0 : i64, tpu.core_type = #tpu.core_type<tc>, window_params = [{transform_indices = @transform_0, window_bounds = array<i64: 16, 36>}, {pipeline_mode = #tpu.pipeline_mode<synchronous>, transform_indices = @transform_1, window_bounds = array<i64: 36, 300>}, {pipeline_mode = #tpu.pipeline_mode<synchronous>, transform_indices = @transform_2, window_bounds = array<i64: 1, 300>}, {pipeline_mode = #tpu.pipeline_mode<synchronous>, transform_indices = @transform_3, window_bounds = array<i64: 300, 200>}, {pipeline_mode = #tpu.pipeline_mode<synchronous>, transform_indices = @transform_4, window_bounds = array<i64: 1, 200>}, {pipeline_mode = #tpu.pipeline_mode<synchronous>, transform_indices = @transform_5, window_bounds = array<i64: 200, 100>}, {pipeline_mode = #tpu.pipeline_mode<synchronous>, transform_indices = @transform_6, window_bounds = array<i64: 1, 100>}, {pipeline_mode = #tpu.pipeline_mode<synchronous>, transform_indices = @transform_7, window_bounds = array<i64: 100, 50>}, {pipeline_mode = #tpu.pipeline_mode<synchronous>, transform_indices = @transform_8, window_bounds = array<i64: 1, 50>}, {pipeline_mode = #tpu.pipeline_mode<synchronous>, transform_indices = @transform_9, window_bounds = array<i64: 50, 8>}, {pipeline_mode = #tpu.pipeline_mode<synchronous>, transform_indices = @transform_10, window_bounds = array<i64: 1, 8>}, {pipeline_mode = #tpu.pipeline_mode<synchronous>, transform_indices = @transform_11, window_bounds = array<i64: 8, 36>}, {pipeline_mode = #tpu.pipeline_mode<synchronous>, transform_indices = @transform_12, window_bounds = array<i64: 1, 36>}, {transform_indices = @transform_13, window_bounds = array<i64: 16, 8>}]} {
    %c0 = arith.constant 0 : index
    %c0_0 = arith.constant 0 : index
    %0 = vector.load %arg1[%c0, %c0_0] : memref<16x36xbf16, #tpu.memory_space<vmem>>, vector<16x36xbf16>
    %c0_1 = arith.constant 0 : index
    %c0_2 = arith.constant 0 : index
    %1 = vector.load %arg2[%c0_1, %c0_2] : memref<36x300xbf16, #tpu.memory_space<vmem>>, vector<36x300xbf16>
    %cst = arith.constant dense<0.000000e+00> : vector<16x300xf32>
    %2 = tpu.matmul %0, %1, %cst {dimension_numbers = #tpu.dot_dimension_numbers<[1], [0], [0], [1], [0, 0, 1, 1], [], []>} : vector<16x36xbf16>, vector<36x300xbf16>, vector<16x300xf32> -> vector<16x300xf32>
    %c0_3 = arith.constant 0 : index
    %c0_4 = arith.constant 0 : index
    %3 = vector.load %arg3[%c0_3, %c0_4] : memref<1x300xf32, #tpu.memory_space<vmem>>, vector<1x300xf32>
    %4 = vector.broadcast %3 : vector<1x300xf32> to vector<16x300xf32>
    %5 = arith.addf %2, %4 : vector<16x300xf32>
    %cst_5 = arith.constant 0.000000e+00 : f32
    %6 = vector.broadcast %cst_5 : f32 to vector<16x300xf32>
    %7 = arith.maximumf %5, %6 : vector<16x300xf32>
    %8 = arith.truncf %7 : vector<16x300xf32> to vector<16x300xbf16>
    %c0_6 = arith.constant 0 : index
    %c0_7 = arith.constant 0 : index
    %9 = vector.load %arg4[%c0_6, %c0_7] : memref<300x200xbf16, #tpu.memory_space<vmem>>, vector<300x200xbf16>
    %cst_8 = arith.constant dense<0.000000e+00> : vector<16x200xf32>
    %10 = tpu.matmul %8, %9, %cst_8 {dimension_numbers = #tpu.dot_dimension_numbers<[1], [0], [0], [1], [0, 0, 1, 1], [], []>} : vector<16x300xbf16>, vector<300x200xbf16>, vector<16x200xf32> -> vector<16x200xf32>
    %c0_9 = arith.constant 0 : index
    %c0_10 = arith.constant 0 : index
    %11 = vector.load %arg5[%c0_9, %c0_10] : memref<1x200xf32, #tpu.memory_space<vmem>>, vector<1x200xf32>
    %12 = vector.broadcast %11 : vector<1x200xf32> to vector<16x200xf32>
    %13 = arith.addf %10, %12 : vector<16x200xf32>
    %cst_11 = arith.constant 0.000000e+00 : f32
    %14 = vector.broadcast %cst_11 : f32 to vector<16x200xf32>
    %15 = arith.maximumf %13, %14 : vector<16x200xf32>
    %16 = arith.truncf %15 : vector<16x200xf32> to vector<16x200xbf16>
    %c0_12 = arith.constant 0 : index
    %c0_13 = arith.constant 0 : index
    %17 = vector.load %arg6[%c0_12, %c0_13] : memref<200x100xbf16, #tpu.memory_space<vmem>>, vector<200x100xbf16>
    %cst_14 = arith.constant dense<0.000000e+00> : vector<16x100xf32>
    %18 = tpu.matmul %16, %17, %cst_14 {dimension_numbers = #tpu.dot_dimension_numbers<[1], [0], [0], [1], [0, 0, 1, 1], [], []>} : vector<16x200xbf16>, vector<200x100xbf16>, vector<16x100xf32> -> vector<16x100xf32>
    %c0_15 = arith.constant 0 : index
    %c0_16 = arith.constant 0 : index
    %19 = vector.load %arg7[%c0_15, %c0_16] : memref<1x100xf32, #tpu.memory_space<vmem>>, vector<1x100xf32>
    %20 = vector.broadcast %19 : vector<1x100xf32> to vector<16x100xf32>
    %21 = arith.addf %18, %20 : vector<16x100xf32>
    %cst_17 = arith.constant 0.000000e+00 : f32
    %22 = vector.broadcast %cst_17 : f32 to vector<16x100xf32>
    %23 = arith.maximumf %21, %22 : vector<16x100xf32>
    %24 = arith.truncf %23 : vector<16x100xf32> to vector<16x100xbf16>
    %c0_18 = arith.constant 0 : index
    %c0_19 = arith.constant 0 : index
    %25 = vector.load %arg8[%c0_18, %c0_19] : memref<100x50xbf16, #tpu.memory_space<vmem>>, vector<100x50xbf16>
    %cst_20 = arith.constant dense<0.000000e+00> : vector<16x50xf32>
    %26 = tpu.matmul %24, %25, %cst_20 {dimension_numbers = #tpu.dot_dimension_numbers<[1], [0], [0], [1], [0, 0, 1, 1], [], []>} : vector<16x100xbf16>, vector<100x50xbf16>, vector<16x50xf32> -> vector<16x50xf32>
    %c0_21 = arith.constant 0 : index
    %c0_22 = arith.constant 0 : index
    %27 = vector.load %arg9[%c0_21, %c0_22] : memref<1x50xf32, #tpu.memory_space<vmem>>, vector<1x50xf32>
    %28 = vector.broadcast %27 : vector<1x50xf32> to vector<16x50xf32>
    %29 = arith.addf %26, %28 : vector<16x50xf32>
    %cst_23 = arith.constant 0.000000e+00 : f32
    %30 = vector.broadcast %cst_23 : f32 to vector<16x50xf32>
    %31 = arith.maximumf %29, %30 : vector<16x50xf32>
    %32 = arith.truncf %31 : vector<16x50xf32> to vector<16x50xbf16>
    %c0_24 = arith.constant 0 : index
    %c0_25 = arith.constant 0 : index
    %33 = vector.load %arg10[%c0_24, %c0_25] : memref<50x8xbf16, #tpu.memory_space<vmem>>, vector<50x8xbf16>
    %cst_26 = arith.constant dense<0.000000e+00> : vector<16x8xf32>
    %34 = tpu.matmul %32, %33, %cst_26 {dimension_numbers = #tpu.dot_dimension_numbers<[1], [0], [0], [1], [0, 0, 1, 1], [], []>} : vector<16x50xbf16>, vector<50x8xbf16>, vector<16x8xf32> -> vector<16x8xf32>
    %c0_27 = arith.constant 0 : index
    %c0_28 = arith.constant 0 : index
    %35 = vector.load %arg11[%c0_27, %c0_28] : memref<1x8xf32, #tpu.memory_space<vmem>>, vector<1x8xf32>
    %36 = vector.broadcast %35 : vector<1x8xf32> to vector<16x8xf32>
    %37 = arith.addf %34, %36 : vector<16x8xf32>
    %38 = arith.truncf %37 : vector<16x8xf32> to vector<16x8xbf16>
    %c0_29 = arith.constant 0 : index
    %c0_30 = arith.constant 0 : index
    %39 = vector.load %arg12[%c0_29, %c0_30] : memref<8x36xbf16, #tpu.memory_space<vmem>>, vector<8x36xbf16>
    %cst_31 = arith.constant dense<0.000000e+00> : vector<16x36xf32>
    %40 = tpu.matmul %38, %39, %cst_31 {dimension_numbers = #tpu.dot_dimension_numbers<[1], [0], [0], [1], [0, 0, 1, 1], [], []>} : vector<16x8xbf16>, vector<8x36xbf16>, vector<16x36xf32> -> vector<16x36xf32>
    %c0_32 = arith.constant 0 : index
    %c0_33 = arith.constant 0 : index
    %41 = vector.load %arg13[%c0_32, %c0_33] : memref<1x36xf32, #tpu.memory_space<vmem>>, vector<1x36xf32>
    %42 = vector.broadcast %41 : vector<1x36xf32> to vector<16x36xf32>
    %43 = arith.addf %40, %42 : vector<16x36xf32>
    %44 = arith.truncf %43 : vector<16x36xf32> to vector<16x36xbf16>
    %c0_34 = arith.constant 0 : index
    %c0_35 = arith.constant 0 : index
    %45 = vector.load %arg2[%c0_34, %c0_35] : memref<36x300xbf16, #tpu.memory_space<vmem>>, vector<36x300xbf16>
    %cst_36 = arith.constant dense<0.000000e+00> : vector<16x300xf32>
    %46 = tpu.matmul %44, %45, %cst_36 {dimension_numbers = #tpu.dot_dimension_numbers<[1], [0], [0], [1], [0, 0, 1, 1], [], []>} : vector<16x36xbf16>, vector<36x300xbf16>, vector<16x300xf32> -> vector<16x300xf32>
    %c0_37 = arith.constant 0 : index
    %c0_38 = arith.constant 0 : index
    %47 = vector.load %arg3[%c0_37, %c0_38] : memref<1x300xf32, #tpu.memory_space<vmem>>, vector<1x300xf32>
    %48 = vector.broadcast %47 : vector<1x300xf32> to vector<16x300xf32>
    %49 = arith.addf %46, %48 : vector<16x300xf32>
    %cst_39 = arith.constant 0.000000e+00 : f32
    %50 = vector.broadcast %cst_39 : f32 to vector<16x300xf32>
    %51 = arith.maximumf %49, %50 : vector<16x300xf32>
    %52 = arith.truncf %51 : vector<16x300xf32> to vector<16x300xbf16>
    %c0_40 = arith.constant 0 : index
    %c0_41 = arith.constant 0 : index
    %53 = vector.load %arg4[%c0_40, %c0_41] : memref<300x200xbf16, #tpu.memory_space<vmem>>, vector<300x200xbf16>
    %cst_42 = arith.constant dense<0.000000e+00> : vector<16x200xf32>
    %54 = tpu.matmul %52, %53, %cst_42 {dimension_numbers = #tpu.dot_dimension_numbers<[1], [0], [0], [1], [0, 0, 1, 1], [], []>} : vector<16x300xbf16>, vector<300x200xbf16>, vector<16x200xf32> -> vector<16x200xf32>
    %c0_43 = arith.constant 0 : index
    %c0_44 = arith.constant 0 : index
    %55 = vector.load %arg5[%c0_43, %c0_44] : memref<1x200xf32, #tpu.memory_space<vmem>>, vector<1x200xf32>
    %56 = vector.broadcast %55 : vector<1x200xf32> to vector<16x200xf32>
    %57 = arith.addf %54, %56 : vector<16x200xf32>
    %cst_45 = arith.constant 0.000000e+00 : f32
    %58 = vector.broadcast %cst_45 : f32 to vector<16x200xf32>
    %59 = arith.maximumf %57, %58 : vector<16x200xf32>
    %60 = arith.truncf %59 : vector<16x200xf32> to vector<16x200xbf16>
    %c0_46 = arith.constant 0 : index
    %c0_47 = arith.constant 0 : index
    %61 = vector.load %arg6[%c0_46, %c0_47] : memref<200x100xbf16, #tpu.memory_space<vmem>>, vector<200x100xbf16>
    %cst_48 = arith.constant dense<0.000000e+00> : vector<16x100xf32>
    %62 = tpu.matmul %60, %61, %cst_48 {dimension_numbers = #tpu.dot_dimension_numbers<[1], [0], [0], [1], [0, 0, 1, 1], [], []>} : vector<16x200xbf16>, vector<200x100xbf16>, vector<16x100xf32> -> vector<16x100xf32>
    %c0_49 = arith.constant 0 : index
    %c0_50 = arith.constant 0 : index
    %63 = vector.load %arg7[%c0_49, %c0_50] : memref<1x100xf32, #tpu.memory_space<vmem>>, vector<1x100xf32>
    %64 = vector.broadcast %63 : vector<1x100xf32> to vector<16x100xf32>
    %65 = arith.addf %62, %64 : vector<16x100xf32>
    %cst_51 = arith.constant 0.000000e+00 : f32
    %66 = vector.broadcast %cst_51 : f32 to vector<16x100xf32>
    %67 = arith.maximumf %65, %66 : vector<16x100xf32>
    %68 = arith.truncf %67 : vector<16x100xf32> to vector<16x100xbf16>
    %c0_52 = arith.constant 0 : index
    %c0_53 = arith.constant 0 : index
    %69 = vector.load %arg8[%c0_52, %c0_53] : memref<100x50xbf16, #tpu.memory_space<vmem>>, vector<100x50xbf16>
    %cst_54 = arith.constant dense<0.000000e+00> : vector<16x50xf32>
    %70 = tpu.matmul %68, %69, %cst_54 {dimension_numbers = #tpu.dot_dimension_numbers<[1], [0], [0], [1], [0, 0, 1, 1], [], []>} : vector<16x100xbf16>, vector<100x50xbf16>, vector<16x50xf32> -> vector<16x50xf32>
    %c0_55 = arith.constant 0 : index
    %c0_56 = arith.constant 0 : index
    %71 = vector.load %arg9[%c0_55, %c0_56] : memref<1x50xf32, #tpu.memory_space<vmem>>, vector<1x50xf32>
    %72 = vector.broadcast %71 : vector<1x50xf32> to vector<16x50xf32>
    %73 = arith.addf %70, %72 : vector<16x50xf32>
    %cst_57 = arith.constant 0.000000e+00 : f32
    %74 = vector.broadcast %cst_57 : f32 to vector<16x50xf32>
    %75 = arith.maximumf %73, %74 : vector<16x50xf32>
    %76 = arith.truncf %75 : vector<16x50xf32> to vector<16x50xbf16>
    %c0_58 = arith.constant 0 : index
    %c0_59 = arith.constant 0 : index
    %77 = vector.load %arg10[%c0_58, %c0_59] : memref<50x8xbf16, #tpu.memory_space<vmem>>, vector<50x8xbf16>
    %cst_60 = arith.constant dense<0.000000e+00> : vector<16x8xf32>
    %78 = tpu.matmul %76, %77, %cst_60 {dimension_numbers = #tpu.dot_dimension_numbers<[1], [0], [0], [1], [0, 0, 1, 1], [], []>} : vector<16x50xbf16>, vector<50x8xbf16>, vector<16x8xf32> -> vector<16x8xf32>
    %c0_61 = arith.constant 0 : index
    %c0_62 = arith.constant 0 : index
    %79 = vector.load %arg11[%c0_61, %c0_62] : memref<1x8xf32, #tpu.memory_space<vmem>>, vector<1x8xf32>
    %80 = vector.broadcast %79 : vector<1x8xf32> to vector<16x8xf32>
    %81 = arith.addf %78, %80 : vector<16x8xf32>
    %c0_63 = arith.constant 0 : index
    %c0_64 = arith.constant 0 : index
    %82 = vector.load %arg14[%c0_63, %c0_64] : memref<16x8xf32, #tpu.memory_space<vmem>>, vector<16x8xf32>
    tpu.vector_store %arg14[%c0_63, %c0_64], %81 {strides = array<i32>} : memref<16x8xf32, #tpu.memory_space<vmem>>, vector<16x8xf32>,
    return
  }
  func.func @transform_0(%arg0: i32) -> (i32, i32) {
    %c0_i32 = arith.constant 0 : i32
    %c0_i32_0 = arith.constant 0 : i32
    return %arg0, %c0_i32 : i32, i32
  }
  func.func @transform_1(%arg0: i32) -> (i32, i32) {
    %c0_i32 = arith.constant 0 : i32
    %c0_i32_0 = arith.constant 0 : i32
    %c0_i32_1 = arith.constant 0 : i32
    return %c0_i32, %c0_i32_0 : i32, i32
  }
  func.func @transform_2(%arg0: i32) -> (i32, i32) {
    %c0_i32 = arith.constant 0 : i32
    %c0_i32_0 = arith.constant 0 : i32
    %c0_i32_1 = arith.constant 0 : i32
    return %c0_i32, %c0_i32_0 : i32, i32
  }
  func.func @transform_3(%arg0: i32) -> (i32, i32) {
    %c0_i32 = arith.constant 0 : i32
    %c0_i32_0 = arith.constant 0 : i32
    %c0_i32_1 = arith.constant 0 : i32
    return %c0_i32, %c0_i32_0 : i32, i32
  }
  func.func @transform_4(%arg0: i32) -> (i32, i32) {
    %c0_i32 = arith.constant 0 : i32
    %c0_i32_0 = arith.constant 0 : i32
    %c0_i32_1 = arith.constant 0 : i32
    return %c0_i32, %c0_i32_0 : i32, i32
  }
  func.func @transform_5(%arg0: i32) -> (i32, i32) {
    %c0_i32 = arith.constant 0 : i32
    %c0_i32_0 = arith.constant 0 : i32
    %c0_i32_1 = arith.constant 0 : i32
    return %c0_i32, %c0_i32_0 : i32, i32
  }
  func.func @transform_6(%arg0: i32) -> (i32, i32) {
    %c0_i32 = arith.constant 0 : i32
    %c0_i32_0 = arith.constant 0 : i32
    %c0_i32_1 = arith.constant 0 : i32
    return %c0_i32, %c0_i32_0 : i32, i32
  }
  func.func @transform_7(%arg0: i32) -> (i32, i32) {
    %c0_i32 = arith.constant 0 : i32
    %c0_i32_0 = arith.constant 0 : i32
    %c0_i32_1 = arith.constant 0 : i32
    return %c0_i32, %c0_i32_0 : i32, i32
  }
  func.func @transform_8(%arg0: i32) -> (i32, i32) {
    %c0_i32 = arith.constant 0 : i32
    %c0_i32_0 = arith.constant 0 : i32
    %c0_i32_1 = arith.constant 0 : i32
    return %c0_i32, %c0_i32_0 : i32, i32
  }
  func.func @transform_9(%arg0: i32) -> (i32, i32) {
    %c0_i32 = arith.constant 0 : i32
    %c0_i32_0 = arith.constant 0 : i32
    %c0_i32_1 = arith.constant 0 : i32
    return %c0_i32, %c0_i32_0 : i32, i32
  }
  func.func @transform_10(%arg0: i32) -> (i32, i32) {
    %c0_i32 = arith.constant 0 : i32
    %c0_i32_0 = arith.constant 0 : i32
    %c0_i32_1 = arith.constant 0 : i32
    return %c0_i32, %c0_i32_0 : i32, i32
  }
  func.func @transform_11(%arg0: i32) -> (i32, i32) {
    %c0_i32 = arith.constant 0 : i32
    %c0_i32_0 = arith.constant 0 : i32
    %c0_i32_1 = arith.constant 0 : i32
    return %c0_i32, %c0_i32_0 : i32, i32
  }
  func.func @transform_12(%arg0: i32) -> (i32, i32) {
    %c0_i32 = arith.constant 0 : i32
    %c0_i32_0 = arith.constant 0 : i32
    %c0_i32_1 = arith.constant 0 : i32
    return %c0_i32, %c0_i32_0 : i32, i32
  }
  func.func @transform_13(%arg0: i32) -> (i32, i32) {
    %c0_i32 = arith.constant 0 : i32
    %c0_i32_0 = arith.constant 0 : i32
    return %arg0, %c0_i32 : i32, i32
  }
}

</mosaic_0001>

<llo_original>
// kernel: tpu_custom_call.1
$region0: #{tpu_custom_call.1}
  #allocation0 [shape = 'u32[]', space=smem, size = 0x4, offset = 0x4, fixed_abs, tag = 'smem constant byte address 0x4 - core index']
  #allocation1 [shape = 'u32[144,128]{1,0:T(1,128)}', space=vmem, size = 0x12000, scoped, tag = 'internal scratch']
  %s0 = inlined_call_operand.vmem [shape: bf16[16,36], index: 0, kind: input, shape index: {}]
  %s1 = inlined_call_operand.vmem [shape: bf16[36,300], index: 1, kind: input, shape index: {}]
  %s2 = inlined_call_operand.vmem [shape: f32[1,300], index: 2, kind: input, shape index: {}]
  %s3 = inlined_call_operand.vmem [shape: bf16[300,200], index: 3, kind: input, shape index: {}]
  %s4 = inlined_call_operand.vmem [shape: f32[1,200], index: 4, kind: input, shape index: {}]
  %s5 = inlined_call_operand.vmem [shape: bf16[200,100], index: 5, kind: input, shape index: {}]
  %s6 = inlined_call_operand.vmem [shape: f32[1,100], index: 6, kind: input, shape index: {}]
  %s7 = inlined_call_operand.vmem [shape: bf16[100,50], index: 7, kind: input, shape index: {}]
  %s8 = inlined_call_operand.vmem [shape: f32[1,50], index: 8, kind: input, shape index: {}]
  %s9 = inlined_call_operand.vmem [shape: bf16[50,8], index: 9, kind: input, shape index: {}]
  %s10 = inlined_call_operand.vmem [shape: f32[1,8], index: 10, kind: input, shape index: {}]
  %s11 = inlined_call_operand.vmem [shape: bf16[8,36], index: 11, kind: input, shape index: {}]
  %s12 = inlined_call_operand.vmem [shape: f32[1,36], index: 12, kind: input, shape index: {}]
  %s13 = inlined_call_operand.vmem [shape: f32[16,8], index: 13, kind: output, shape index: {}]
  %s14 = sld [smem:[#allocation0]]
  $region62: #{tpu_custom_call.1} parent=0
    _
  %s16 = ssub.s32 1, %s14
  %s17 = scalar_select 0, %s16, %s14
  // Predicated region
  $region2: #{tpu_custom_call.1} parent=0 // pred_check
    _
  $region3: #{tpu_custom_call.1} parent=0 // pred_check_branch
    %19 = sbr.rel (0) target = $region5
  $region4: #{tpu_custom_call.1} parent=0 // pred_region
    _
  $region5: #{tpu_custom_call.1} parent=0 // pred_fallthru
    _
  // Predicated region
  $region6: #{tpu_custom_call.1} parent=0 // pred_check
    _
  $region7: #{tpu_custom_call.1} parent=0 // pred_check_branch
    %21 = sbr.rel (0) target = $region9
  $region8: #{tpu_custom_call.1} parent=0 // pred_region
    _
  $region9: #{tpu_custom_call.1} parent=0 // pred_fallthru
    _
  // Predicated region
  $region10: #{tpu_custom_call.1} parent=0 // pred_check
    _
  $region11: #{tpu_custom_call.1} parent=0 // pred_check_branch
    %23 = sbr.rel (0) target = $region13
  $region12: #{tpu_custom_call.1} parent=0 // pred_region
    _
  $region13: #{tpu_custom_call.1} parent=0 // pred_fallthru
    _
  // Predicated region
  $region14: #{tpu_custom_call.1} parent=0 // pred_check
    _
  $region15: #{tpu_custom_call.1} parent=0 // pred_check_branch
    %25 = sbr.rel (0) target = $region17
  $region16: #{tpu_custom_call.1} parent=0 // pred_region
    _
  $region17: #{tpu_custom_call.1} parent=0 // pred_fallthru
    _
  // Predicated region
  $region18: #{tpu_custom_call.1} parent=0 // pred_check
    _
  $region19: #{tpu_custom_call.1} parent=0 // pred_check_branch
    %27 = sbr.rel (0) target = $region21
  $region20: #{tpu_custom_call.1} parent=0 // pred_region
    _
  $region21: #{tpu_custom_call.1} parent=0 // pred_fallthru
    _
  // Predicated region
  $region22: #{tpu_custom_call.1} parent=0 // pred_check
    _
  $region23: #{tpu_custom_call.1} parent=0 // pred_check_branch
    %29 = sbr.rel (0) target = $region25
  $region24: #{tpu_custom_call.1} parent=0 // pred_region
    _
  $region25: #{tpu_custom_call.1} parent=0 // pred_fallthru
    _
  // Predicated region
  $region26: #{tpu_custom_call.1} parent=0 // pred_check
    _
  $region27: #{tpu_custom_call.1} parent=0 // pred_check_branch
    %31 = sbr.rel (0) target = $region29
  $region28: #{tpu_custom_call.1} parent=0 // pred_region
    _
  $region29: #{tpu_custom_call.1} parent=0 // pred_fallthru
    _
  // Predicated region
  $region30: #{tpu_custom_call.1} parent=0 // pred_check
    _
  $region31: #{tpu_custom_call.1} parent=0 // pred_check_branch
    %33 = sbr.rel (0) target = $region33
  $region32: #{tpu_custom_call.1} parent=0 // pred_region
    _
  $region33: #{tpu_custom_call.1} parent=0 // pred_fallthru
    _
  // Predicated region
  $region34: #{tpu_custom_call.1} parent=0 // pred_check
    _
  $region35: #{tpu_custom_call.1} parent=0 // pred_check_branch
    %35 = sbr.rel (0) target = $region37
  $region36: #{tpu_custom_call.1} parent=0 // pred_region
    _
  $region37: #{tpu_custom_call.1} parent=0 // pred_fallthru
    _
  // Predicated region
  $region38: #{tpu_custom_call.1} parent=0 // pred_check
    _
  $region39: #{tpu_custom_call.1} parent=0 // pred_check_branch
    %37 = sbr.rel (0) target = $region41
  $region40: #{tpu_custom_call.1} parent=0 // pred_region
    _
  $region41: #{tpu_custom_call.1} parent=0 // pred_fallthru
    _
  // Predicated region
  $region42: #{tpu_custom_call.1} parent=0 // pred_check
    _
  $region43: #{tpu_custom_call.1} parent=0 // pred_check_branch
    %39 = sbr.rel (0) target = $region45
  $region44: #{tpu_custom_call.1} parent=0 // pred_region
    _
  $region45: #{tpu_custom_call.1} parent=0 // pred_fallthru
    _
  // Predicated region
  $region46: #{tpu_custom_call.1} parent=0 // pred_check
    _
  $region47: #{tpu_custom_call.1} parent=0 // pred_check_branch
    %41 = sbr.rel (0) target = $region49
  $region48: #{tpu_custom_call.1} parent=0 // pred_region
    _
  $region49: #{tpu_custom_call.1} parent=0 // pred_fallthru
    _
  // Predicated region
  $region50: #{tpu_custom_call.1} parent=0 // pred_check
    _
  $region51: #{tpu_custom_call.1} parent=0 // pred_check_branch
    %43 = sbr.rel (0) target = $region53
  $region52: #{tpu_custom_call.1} parent=0 // pred_region
    _
  $region53: #{tpu_custom_call.1} parent=0 // pred_fallthru
    _
  %v45 = vld [vmem:[%s0] sm:$0xf]
  %v46 = vld [vmem:[%s0 + $0x4] sm:$0xf]
  %v47 = vld [vmem:[%s1] sm:$0xff]
  %v48 = vld [vmem:[%s1 + $0x8] sm:$0xf]
  %v49 = vld [vmem:[%s1 + $0xc] sm:$0xff]
  %v50 = vld [vmem:[%s1 + $0x14] sm:$0xf]
  %v51 = vld [vmem:[%s1 + $0x18] sm:$0xff]
  %v52 = vld [vmem:[%s1 + $0x20] sm:$0xf]
  %v53 = vld [vmem:[%s1 + $0x24] sm:$0xff]
  %v54 = vld [vmem:[%s1 + $0x2c] sm:$0xf]
  %v55 = vld [vmem:[%s1 + $0x30] sm:$0x33]
  %v56 = vld [vmem:[%s1 + $0x38] sm:$0x3]
  %v57 = vld [vmem:[%s2] sm:$0x7]
  %v59 = vlaneseq
  %v60 = vshrl.u32 %v59, 7
  %v61 = vsub.s32 0, %v60
  %v62 = vrot.slane %v57, %v61
  %v63 = vlaneseq
  %v64 = vshrl.u32 %v63, 7
  %v65 = vsub.s32 1, %v64
  %v66 = vrot.slane %v57, %v65
  %v67 = vlaneseq
  %v68 = vshrl.u32 %v67, 7
  %v69 = vsub.s32 2, %v68
  %v70 = vrot.slane %v57, %v69
  %v76 = vunpack.c.l.b16 %v45
  %v77 = vunpack.c.l.b16 %v46
  %v78 = vpack.c.b16 %v77, %v76
  %v89 = vunpack.c.l.b16 %v47
  %v90 = vunpack.c.h.b16 %v47
  %v91 = vunpack.c.l.b16 %v48
  %v92 = vunpack.c.l.b16 %v49
  %v93 = vunpack.c.h.b16 %v49
  %v94 = vunpack.c.l.b16 %v50
  %v95 = vunpack.c.l.b16 %v51
  %v96 = vunpack.c.h.b16 %v51
  %v97 = vunpack.c.l.b16 %v52
  %v98 = vunpack.c.l.b16 %v53
  %v99 = vunpack.c.h.b16 %v53
  %v100 = vunpack.c.l.b16 %v54
  %v101 = vunpack.c.l.b16 %v55
  %v102 = vunpack.c.h.b16 %v55
  %v103 = vunpack.c.l.b16 %v56
  %v104 = vpack.c.b16 %v92, %v89
  %v105 = vpack.c.b16 %v93, %v90
  %v106 = vpack.c.b16 %v94, %v91
  %v107 = vpack.c.b16 %v98, %v95
  %v108 = vpack.c.b16 %v99, %v96
  %v109 = vpack.c.b16 %v100, %v97
  %v110 = vpack.c.b16 %v101, %v101
  %v111 = vpack.c.b16 %v102, %v102
  %v112 = vpack.c.b16 %v103, %v103
  %vm119 = vcmask 293888
  %v121 = vsel %vm119, %v78, 0
  %vm123 = vcmask 1041408
  %v125 = vsel %vm123, %v110, 0
  %v128 = vsel %vm123, %v111, 0
  %v131 = vsel %vm123, %v112, 0
  %133 = vmatprep.subr.bf16.mxu0 %v105
  %134 = vmatpush1.bf16.msra.mxu0 %v104
  %135 = vmatprep.subr.bf16.mxu0 %v108
  %136 = vmatpush1.bf16.msra.mxu0 %v107
  %137 = vmatprep.subr.bf16.mxu0 %v128
  %138 = vmatpush1.bf16.msra.mxu0 %v125
  %139 = vmatprep.subr.bf16.mxu0 0
  %140 = vmatpush1.bf16.msra.mxu0 0
  %141 = vmatprep.subr.bf16.mxu0 0
  %142 = vmatpush1.bf16.msra.mxu0 0
  %143 = vmatprep.subr.bf16.mxu0 0
  %144 = vmatpush1.bf16.msra.mxu0 0
  %145 = vmatprep.subr.bf16.mxu0 0
  %146 = vmatpush1.bf16.msra.mxu0 0
  %147 = vmatprep.subr.bf16.mxu0 0
  %148 = vmatpush1.bf16.msra.mxu0 0
  %149 = vmatprep.subr.bf16.mxu0 0
  %150 = vmatpush1.bf16.msra.mxu0 0
  %151 = vmatprep.subr.bf16.mxu0 0
  %152 = vmatpush1.bf16.msra.mxu0 0
  %153 = vmatprep.subr.bf16.mxu0 0
  %154 = vmatpush1.bf16.msra.mxu0 0
  %155 = vmatprep.subr.bf16.mxu0 0
  %156 = vmatpush1.bf16.msra.mxu0 0
  %157 = vmatprep.subr.bf16.mxu0 0
  %158 = vmatpush1.bf16.msra.mxu0 0
  %159 = vmatprep.subr.bf16.mxu0 0
  %160 = vmatpush1.bf16.msra.mxu0 0
  %161 = vmatprep.subr.bf16.mxu0 0
  %162 = vmatpush1.bf16.msra.mxu0 0
  %163 = vmatprep.subr.bf16.mxu0 0
  %164 = vmatpush1.bf16.msra.mxu0 0
  %165 = vmatprep.mubr.bf16.mxu0 0
  %166 = vmatmul.mubr.bf16.gmra.mrb[0].mxu0 %v121
  %v167 = vpop.f32.mrb[0].mxu0
  %v168 = vadd.f32 %v62, %v167
  %v169 = vpop.f32.mrb[0].mxu0
  %v170 = vadd.f32 %v66, %v169
  %v171 = vpop.f32.mrb[0].mxu0
  %v172 = vadd.f32 %v62, %v171
  %v173 = vpop.f32.mrb[0].mxu0
  %v174 = vadd.f32 %v66, %v173
  %175 = vdwg.mxu0
  %176 = vmatprep.subr.bf16.mxu0 0
  %177 = vmatpush1.bf16.msra.mxu0 %v106
  %178 = vmatprep.subr.bf16.mxu0 0
  %179 = vmatpush1.bf16.msra.mxu0 %v109
  %180 = vmatprep.subr.bf16.mxu0 0
  %181 = vmatpush1.bf16.msra.mxu0 %v131
  %182 = vmatprep.subr.bf16.mxu0 0
  %183 = vmatpush1.bf16.msra.mxu0 0
  %184 = vmatprep.subr.bf16.mxu0 0
  %185 = vmatpush1.bf16.msra.mxu0 0
  %186 = vmatprep.subr.bf16.mxu0 0
  %187 = vmatpush1.bf16.msra.mxu0 0
  %188 = vmatprep.subr.bf16.mxu0 0
  %189 = vmatpush1.bf16.msra.mxu0 0
  %190 = vmatprep.subr.bf16.mxu0 0
  %191 = vmatpush1.bf16.msra.mxu0 0
  %192 = vmatprep.subr.bf16.mxu0 0
  %193 = vmatpush1.bf16.msra.mxu0 0
  %194 = vmatprep.subr.bf16.mxu0 0
  %195 = vmatpush1.bf16.msra.mxu0 0
  %196 = vmatprep.subr.bf16.mxu0 0
  %197 = vmatpush1.bf16.msra.mxu0 0
  %198 = vmatprep.subr.bf16.mxu0 0
  %199 = vmatpush1.bf16.msra.mxu0 0
  %200 = vmatprep.subr.bf16.mxu0 0
  %201 = vmatpush1.bf16.msra.mxu0 0
  %202 = vmatprep.subr.bf16.mxu0 0
  %203 = vmatpush1.bf16.msra.mxu0 0
  %204 = vmatprep.subr.bf16.mxu0 0
  %205 = vmatpush1.bf16.msra.mxu0 0
  %206 = vmatprep.subr.bf16.mxu0 0
  %207 = vmatpush1.bf16.msra.mxu0 0
  %208 = vmatprep.mubr.bf16.mxu0 0
  %209 = vmatmul.mubr.bf16.gmra.mrb[0].mxu0 %v121
  %v210 = vpop.f32.mrb[0].mxu0
  %v211 = vadd.f32 %v70, %v210
  %v212 = vpop.f32.mrb[0].mxu0
  %v213 = vpop.f32.mrb[0].mxu0
  %v214 = vadd.f32 %v70, %v213
  %v215 = vpop.f32.mrb[0].mxu0
  %216 = vdwg.mxu0
  %v217 = vmax.f32 %v168, 0.0
  %v218 = vmax.f32 %v170, 0.0
  %v219 = vmax.f32 %v211, 0.0
  %v220 = vmax.f32 %v172, 0.0
  %v221 = vmax.f32 %v174, 0.0
  %v222 = vmax.f32 %v214, 0.0
  %v223 = vpack.c.bf16 %v220, %v217
  %v224 = vpack.c.bf16 %v221, %v218
  %v225 = vpack.c.bf16 %v222, %v219
  %v226 = vld [vmem:[%s3] sm:$0xff]
  %v227 = vld [vmem:[%s3 + $0x8] sm:$0xff]
  %v228 = vld [vmem:[%s3 + $0x10] sm:$0xff]
  %v229 = vld [vmem:[%s3 + $0x18] sm:$0xff]
  %v230 = vld [vmem:[%s3 + $0x20] sm:$0xff]
  %v231 = vld [vmem:[%s3 + $0x28] sm:$0xff]
  %v232 = vld [vmem:[%s3 + $0x30] sm:$0xff]
  %v233 = vld [vmem:[%s3 + $0x38] sm:$0xff]
  %v234 = vld [vmem:[%s3 + $0x40] sm:$0xff]
  %v235 = vld [vmem:[%s3 + $0x48] sm:$0xff]
  %v236 = vld [vmem:[%s3 + $0x50] sm:$0xff]
  %v237 = vld [vmem:[%s3 + $0x58] sm:$0xff]
  %v238 = vld [vmem:[%s3 + $0x60] sm:$0xff]
  %v239 = vld [vmem:[%s3 + $0x68] sm:$0xff]
  %v240 = vld [vmem:[%s3 + $0x70] sm:$0xff]
  %v241 = vld [vmem:[%s3 + $0x78] sm:$0xff]
  %v242 = vld [vmem:[%s3 + $0x80] sm:$0xff]
  %v243 = vld [vmem:[%s3 + $0x88] sm:$0xff]
  %v244 = vld [vmem:[%s3 + $0x90] sm:$0xff]
  %v245 = vld [vmem:[%s3 + $0x98] sm:$0xff]
  %v246 = vld [vmem:[%s3 + $0xa0] sm:$0xff]
  %v247 = vld [vmem:[%s3 + $0xa8] sm:$0xff]
  %v248 = vld [vmem:[%s3 + $0xb0] sm:$0xff]
  %v249 = vld [vmem:[%s3 + $0xb8] sm:$0xff]
  %v250 = vld [vmem:[%s3 + $0xc0] sm:$0xff]
  %v251 = vld [vmem:[%s3 + $0xc8] sm:$0xff]
  %v252 = vld [vmem:[%s3 + $0xd0] sm:$0xff]
  %v253 = vld [vmem:[%s3 + $0xd8] sm:$0xff]
  %v254 = vld [vmem:[%s3 + $0xe0] sm:$0xff]
  %v255 = vld [vmem:[%s3 + $0xe8] sm:$0xff]
  %v256 = vld [vmem:[%s3 + $0xf0] sm:$0xff]
  %v257 = vld [vmem:[%s3 + $0xf8] sm:$0xff]
  %v258 = vld [vmem:[%s3 + $0x100] sm:$0xff]
  %v259 = vld [vmem:[%s3 + $0x108] sm:$0xff]
  %v260 = vld [vmem:[%s3 + $0x110] sm:$0xff]
  %v261 = vld [vmem:[%s3 + $0x118] sm:$0xff]
  %v262 = vld [vmem:[%s3 + $0x120] sm:$0xff]
  %v263 = vld [vmem:[%s3 + $0x128] sm:$0x33]
  %v264 = vld [vmem:[%s4] sm:$0x3]
  %v266 = vlaneseq
  %v267 = vshrl.u32 %v266, 7
  %v268 = vsub.s32 0, %v267
  %v269 = vrot.slane %v264, %v268
  %v270 = vlaneseq
  %v271 = vshrl.u32 %v270, 7
  %v272 = vsub.s32 1, %v271
  %v273 = vrot.slane %v264, %v272
  %v314 = vunpack.c.l.b16 %v226
  %v315 = vunpack.c.h.b16 %v226
  %v316 = vunpack.c.l.b16 %v227
  %v317 = vunpack.c.h.b16 %v227
  %v318 = vunpack.c.l.b16 %v228
  %v319 = vunpack.c.h.b16 %v228
  %v320 = vunpack.c.l.b16 %v229
  %v321 = vunpack.c.h.b16 %v229
  %v322 = vunpack.c.l.b16 %v230
  %v323 = vunpack.c.h.b16 %v230
  %v324 = vunpack.c.l.b16 %v231
  %v325 = vunpack.c.h.b16 %v231
  %v326 = vunpack.c.l.b16 %v232
  %v327 = vunpack.c.h.b16 %v232
  %v328 = vunpack.c.l.b16 %v233
  %v329 = vunpack.c.h.b16 %v233
  %v330 = vunpack.c.l.b16 %v234
  %v331 = vunpack.c.h.b16 %v234
  %v332 = vunpack.c.l.b16 %v235
  %v333 = vunpack.c.h.b16 %v235
  %v334 = vunpack.c.l.b16 %v236
  %v335 = vunpack.c.h.b16 %v236
  %v336 = vunpack.c.l.b16 %v237
  %v337 = vunpack.c.h.b16 %v237
  %v338 = vunpack.c.l.b16 %v238
  %v339 = vunpack.c.h.b16 %v238
  %v340 = vunpack.c.l.b16 %v239
  %v341 = vunpack.c.h.b16 %v239
  %v342 = vunpack.c.l.b16 %v240
  %v343 = vunpack.c.h.b16 %v240
  %v344 = vunpack.c.l.b16 %v241
  %v345 = vunpack.c.h.b16 %v241
  %v346 = vunpack.c.l.b16 %v242
  %v347 = vunpack.c.h.b16 %v242
  %v348 = vunpack.c.l.b16 %v243
  %v349 = vunpack.c.h.b16 %v243
  %v350 = vunpack.c.l.b16 %v244
  %v351 = vunpack.c.h.b16 %v244
  %v352 = vunpack.c.l.b16 %v245
  %v353 = vunpack.c.h.b16 %v245
  %v354 = vunpack.c.l.b16 %v246
  %v355 = vunpack.c.h.b16 %v246
  %v356 = vunpack.c.l.b16 %v247
  %v357 = vunpack.c.h.b16 %v247
  %v358 = vunpack.c.l.b16 %v248
  %v359 = vunpack.c.h.b16 %v248
  %v360 = vunpack.c.l.b16 %v249
  %v361 = vunpack.c.h.b16 %v249
  %v362 = vunpack.c.l.b16 %v250
  %v363 = vunpack.c.h.b16 %v250
  %v364 = vunpack.c.l.b16 %v251
  %v365 = vunpack.c.h.b16 %v251
  %v366 = vunpack.c.l.b16 %v252
  %v367 = vunpack.c.h.b16 %v252
  %v368 = vunpack.c.l.b16 %v253
  %v369 = vunpack.c.h.b16 %v253
  %v370 = vunpack.c.l.b16 %v254
  %v371 = vunpack.c.h.b16 %v254
  %v372 = vunpack.c.l.b16 %v255
  %v373 = vunpack.c.h.b16 %v255
  %v374 = vunpack.c.l.b16 %v256
  %v375 = vunpack.c.h.b16 %v256
  %v376 = vunpack.c.l.b16 %v257
  %v377 = vunpack.c.h.b16 %v257
  %v378 = vunpack.c.l.b16 %v258
  %v379 = vunpack.c.h.b16 %v258
  %v380 = vunpack.c.l.b16 %v259
  %v381 = vunpack.c.h.b16 %v259
  %v382 = vunpack.c.l.b16 %v260
  %v383 = vunpack.c.h.b16 %v260
  %v384 = vunpack.c.l.b16 %v261
  %v385 = vunpack.c.h.b16 %v261
  %v386 = vunpack.c.l.b16 %v262
  %v387 = vunpack.c.h.b16 %v262
  %v388 = vunpack.c.l.b16 %v263
  %v389 = vunpack.c.h.b16 %v263
  %v390 = vpack.c.b16 %v316, %v314
  %v391 = vpack.c.b16 %v317, %v315
  %v392 = vpack.c.b16 %v320, %v318
  %v393 = vpack.c.b16 %v321, %v319
  %v394 = vpack.c.b16 %v324, %v322
  %v395 = vpack.c.b16 %v325, %v323
  %v396 = vpack.c.b16 %v328, %v326
  %v397 = vpack.c.b16 %v329, %v327
  %v398 = vpack.c.b16 %v332, %v330
  %v399 = vpack.c.b16 %v333, %v331
  %v400 = vpack.c.b16 %v336, %v334
  %v401 = vpack.c.b16 %v337, %v335
  %v402 = vpack.c.b16 %v340, %v338
  %v403 = vpack.c.b16 %v341, %v339
  %v404 = vpack.c.b16 %v344, %v342
  %v405 = vpack.c.b16 %v345, %v343
  %v406 = vpack.c.b16 %v348, %v346
  %v407 = vpack.c.b16 %v349, %v347
  %v408 = vpack.c.b16 %v352, %v350
  %v409 = vpack.c.b16 %v353, %v351
  %v410 = vpack.c.b16 %v356, %v354
  %v411 = vpack.c.b16 %v357, %v355
  %v412 = vpack.c.b16 %v360, %v358
  %v413 = vpack.c.b16 %v361, %v359
  %v414 = vpack.c.b16 %v364, %v362
  %v415 = vpack.c.b16 %v365, %v363
  %v416 = vpack.c.b16 %v368, %v366
  %v417 = vpack.c.b16 %v369, %v367
  %v418 = vpack.c.b16 %v372, %v370
  %v419 = vpack.c.b16 %v373, %v371
  %v420 = vpack.c.b16 %v376, %v374
  %v421 = vpack.c.b16 %v377, %v375
  %v422 = vpack.c.b16 %v380, %v378
  %v423 = vpack.c.b16 %v381, %v379
  %v424 = vpack.c.b16 %v384, %v382
  %v425 = vpack.c.b16 %v385, %v383
  %v426 = vpack.c.b16 %v388, %v386
  %v427 = vpack.c.b16 %v389, %v387
  %vm464 = vcmask 359424
  %v466 = vsel %vm464, %v225, 0
  %vm468 = vcmask 1045504
  %v470 = vsel %vm468, %v426, 0
  %v473 = vsel %vm468, %v427, 0
  %475 = vmatprep.subr.bf16.mxu0 %v391
  %476 = vmatpush1.bf16.msra.mxu0 %v390
  %477 = vmatprep.subr.bf16.mxu0 %v393
  %478 = vmatpush1.bf16.msra.mxu0 %v392
  %479 = vmatprep.subr.bf16.mxu0 %v395
  %480 = vmatpush1.bf16.msra.mxu0 %v394
  %481 = vmatprep.subr.bf16.mxu0 %v397
  %482 = vmatpush1.bf16.msra.mxu0 %v396
  %483 = vmatprep.subr.bf16.mxu0 %v399
  %484 = vmatpush1.bf16.msra.mxu0 %v398
  %485 = vmatprep.subr.bf16.mxu0 %v401
  %486 = vmatpush1.bf16.msra.mxu0 %v400
  %487 = vmatprep.subr.bf16.mxu0 %v403
  %488 = vmatpush1.bf16.msra.mxu0 %v402
  %489 = vmatprep.subr.bf16.mxu0 %v405
  %490 = vmatpush1.bf16.msra.mxu0 %v404
  %491 = vmatprep.subr.bf16.mxu0 %v407
  %492 = vmatpush1.bf16.msra.mxu0 %v406
  %493 = vmatprep.subr.bf16.mxu0 %v409
  %494 = vmatpush1.bf16.msra.mxu0 %v408
  %495 = vmatprep.subr.bf16.mxu0 %v411
  %496 = vmatpush1.bf16.msra.mxu0 %v410
  %497 = vmatprep.subr.bf16.mxu0 %v413
  %498 = vmatpush1.bf16.msra.mxu0 %v412
  %499 = vmatprep.subr.bf16.mxu0 %v415
  %500 = vmatpush1.bf16.msra.mxu0 %v414
  %501 = vmatprep.subr.bf16.mxu0 %v417
  %502 = vmatpush1.bf16.msra.mxu0 %v416
  %503 = vmatprep.subr.bf16.mxu0 %v419
  %504 = vmatpush1.bf16.msra.mxu0 %v418
  %505 = vmatprep.subr.bf16.mxu0 %v421
  %506 = vmatpush1.bf16.msra.mxu0 %v420
  %507 = vmatprep.mubr.bf16.mxu0 %v224
  %508 = vmatmul.mubr.bf16.gmra.mrb[0].mxu0 %v223
  %v509 = vpop.f32.mrb[0].mxu0
  %v510 = vadd.f32 %v269, %v509
  %v511 = vpop.f32.mrb[0].mxu0
  %v512 = vadd.f32 %v273, %v511
  %v513 = vpop.f32.mrb[0].mxu0
  %v514 = vadd.f32 %v269, %v513
  %v515 = vpop.f32.mrb[0].mxu0
  %v516 = vadd.f32 %v273, %v515
  %517 = vdwg.mxu0
  %518 = vmatprep.subr.bf16.mxu0 %v423
  %519 = vmatpush1.bf16.msra.mxu0 %v422
  %520 = vmatprep.subr.bf16.mxu0 %v425
  %521 = vmatpush1.bf16.msra.mxu0 %v424
  %522 = vmatprep.subr.bf16.mxu0 %v473
  %523 = vmatpush1.bf16.msra.mxu0 %v470
  %524 = vmatprep.subr.bf16.mxu0 0
  %525 = vmatpush1.bf16.msra.mxu0 0
  %526 = vmatprep.subr.bf16.mxu0 0
  %527 = vmatpush1.bf16.msra.mxu0 0
  %528 = vmatprep.subr.bf16.mxu0 0
  %529 = vmatpush1.bf16.msra.mxu0 0
  %530 = vmatprep.subr.bf16.mxu0 0
  %531 = vmatpush1.bf16.msra.mxu0 0
  %532 = vmatprep.subr.bf16.mxu0 0
  %533 = vmatpush1.bf16.msra.mxu0 0
  %534 = vmatprep.subr.bf16.mxu0 0
  %535 = vmatpush1.bf16.msra.mxu0 0
  %536 = vmatprep.subr.bf16.mxu0 0
  %537 = vmatpush1.bf16.msra.mxu0 0
  %538 = vmatprep.subr.bf16.mxu0 0
  %539 = vmatpush1.bf16.msra.mxu0 0
  %540 = vmatprep.subr.bf16.mxu0 0
  %541 = vmatpush1.bf16.msra.mxu0 0
  %542 = vmatprep.subr.bf16.mxu0 0
  %543 = vmatpush1.bf16.msra.mxu0 0
  %544 = vmatprep.subr.bf16.mxu0 0
  %545 = vmatpush1.bf16.msra.mxu0 0
  %546 = vmatprep.subr.bf16.mxu0 0
  %547 = vmatpush1.bf16.msra.mxu0 0
  %548 = vmatprep.subr.bf16.mxu0 0
  %549 = vmatpush1.bf16.msra.mxu0 0
  %550 = vmatprep.mubr.bf16.mxu0 0
  %551 = vmatmul.mubr.bf16.gmra.mrb[0].mxu0 %v466
  %v552 = vpop.f32.mrb[0].mxu0
  %v553 = vadd.f32 %v510, %v552
  %v554 = vpop.f32.mrb[0].mxu0
  %v555 = vadd.f32 %v512, %v554
  %v556 = vpop.f32.mrb[0].mxu0
  %v557 = vadd.f32 %v514, %v556
  %v558 = vpop.f32.mrb[0].mxu0
  %v559 = vadd.f32 %v516, %v558
  %560 = vdwg.mxu0
  %v561 = vmax.f32 %v553, 0.0
  %v562 = vmax.f32 %v555, 0.0
  %v563 = vmax.f32 %v557, 0.0
  %v564 = vmax.f32 %v559, 0.0
  %v565 = vpack.c.bf16 %v563, %v561
  %v566 = vpack.c.bf16 %v564, %v562
  %v567 = vld [vmem:[%s5] sm:$0xf]
  %v568 = vld [vmem:[%s5 + $0x4] sm:$0xf]
  %v569 = vld [vmem:[%s5 + $0x8] sm:$0xf]
  %v570 = vld [vmem:[%s5 + $0xc] sm:$0xf]
  %v571 = vld [vmem:[%s5 + $0x10] sm:$0xf]
  %v572 = vld [vmem:[%s5 + $0x14] sm:$0xf]
  %v573 = vld [vmem:[%s5 + $0x18] sm:$0xf]
  %v574 = vld [vmem:[%s5 + $0x1c] sm:$0xf]
  %v575 = vld [vmem:[%s5 + $0x20] sm:$0xf]
  %v576 = vld [vmem:[%s5 + $0x24] sm:$0xf]
  %v577 = vld [vmem:[%s5 + $0x28] sm:$0xf]
  %v578 = vld [vmem:[%s5 + $0x2c] sm:$0xf]
  %v579 = vld [vmem:[%s5 + $0x30] sm:$0xf]
  %v580 = vld [vmem:[%s5 + $0x34] sm:$0xf]
  %v581 = vld [vmem:[%s5 + $0x38] sm:$0xf]
  %v582 = vld [vmem:[%s5 + $0x3c] sm:$0xf]
  %v583 = vld [vmem:[%s5 + $0x40] sm:$0xf]
  %v584 = vld [vmem:[%s5 + $0x44] sm:$0xf]
  %v585 = vld [vmem:[%s5 + $0x48] sm:$0xf]
  %v586 = vld [vmem:[%s5 + $0x4c] sm:$0xf]
  %v587 = vld [vmem:[%s5 + $0x50] sm:$0xf]
  %v588 = vld [vmem:[%s5 + $0x54] sm:$0xf]
  %v589 = vld [vmem:[%s5 + $0x58] sm:$0xf]
  %v590 = vld [vmem:[%s5 + $0x5c] sm:$0xf]
  %v591 = vld [vmem:[%s5 + $0x60] sm:$0xf]
  %v592 = vld [vmem:[%s6] sm:$0x1]
  %v594 = vlaneseq
  %v595 = vshrl.u32 %v594, 7
  %v596 = vsub.s32 0, %v595
  %v597 = vrot.slane %v592, %v596
  %v624 = vunpack.c.l.b16 %v567
  %v625 = vunpack.c.l.b16 %v568
  %v626 = vunpack.c.l.b16 %v569
  %v627 = vunpack.c.l.b16 %v570
  %v628 = vunpack.c.l.b16 %v571
  %v629 = vunpack.c.l.b16 %v572
  %v630 = vunpack.c.l.b16 %v573
  %v631 = vunpack.c.l.b16 %v574
  %v632 = vunpack.c.l.b16 %v575
  %v633 = vunpack.c.l.b16 %v576
  %v634 = vunpack.c.l.b16 %v577
  %v635 = vunpack.c.l.b16 %v578
  %v636 = vunpack.c.l.b16 %v579
  %v637 = vunpack.c.l.b16 %v580
  %v638 = vunpack.c.l.b16 %v581
  %v639 = vunpack.c.l.b16 %v582
  %v640 = vunpack.c.l.b16 %v583
  %v641 = vunpack.c.l.b16 %v584
  %v642 = vunpack.c.l.b16 %v585
  %v643 = vunpack.c.l.b16 %v586
  %v644 = vunpack.c.l.b16 %v587
  %v645 = vunpack.c.l.b16 %v588
  %v646 = vunpack.c.l.b16 %v589
  %v647 = vunpack.c.l.b16 %v590
  %v648 = vunpack.c.l.b16 %v591
  %v649 = vpack.c.b16 %v625, %v624
  %v650 = vpack.c.b16 %v627, %v626
  %v651 = vpack.c.b16 %v629, %v628
  %v652 = vpack.c.b16 %v631, %v630
  %v653 = vpack.c.b16 %v633, %v632
  %v654 = vpack.c.b16 %v635, %v634
  %v655 = vpack.c.b16 %v637, %v636
  %v656 = vpack.c.b16 %v639, %v638
  %v657 = vpack.c.b16 %v641, %v640
  %v658 = vpack.c.b16 %v643, %v642
  %v659 = vpack.c.b16 %v645, %v644
  %v660 = vpack.c.b16 %v647, %v646
  %v661 = vpack.c.b16 %v648, %v648
  %vm674 = vcmask 588800
  %v676 = vsel %vm674, %v566, 0
  %vm678 = vcmask 1043456
  %v680 = vsel %vm678, %v661, 0
  %682 = vmatprep.subr.bf16.mxu0 0
  %683 = vmatpush1.bf16.msra.mxu0 %v649
  %684 = vmatprep.subr.bf16.mxu0 0
  %685 = vmatpush1.bf16.msra.mxu0 %v650
  %686 = vmatprep.subr.bf16.mxu0 0
  %687 = vmatpush1.bf16.msra.mxu0 %v651
  %688 = vmatprep.subr.bf16.mxu0 0
  %689 = vmatpush1.bf16.msra.mxu0 %v652
  %690 = vmatprep.subr.bf16.mxu0 0
  %691 = vmatpush1.bf16.msra.mxu0 %v653
  %692 = vmatprep.subr.bf16.mxu0 0
  %693 = vmatpush1.bf16.msra.mxu0 %v654
  %694 = vmatprep.subr.bf16.mxu0 0
  %695 = vmatpush1.bf16.msra.mxu0 %v655
  %696 = vmatprep.subr.bf16.mxu0 0
  %697 = vmatpush1.bf16.msra.mxu0 %v656
  %698 = vmatprep.subr.bf16.mxu0 0
  %699 = vmatpush1.bf16.msra.mxu0 %v657
  %700 = vmatprep.subr.bf16.mxu0 0
  %701 = vmatpush1.bf16.msra.mxu0 %v658
  %702 = vmatprep.subr.bf16.mxu0 0
  %703 = vmatpush1.bf16.msra.mxu0 %v659
  %704 = vmatprep.subr.bf16.mxu0 0
  %705 = vmatpush1.bf16.msra.mxu0 %v660
  %706 = vmatprep.subr.bf16.mxu0 0
  %707 = vmatpush1.bf16.msra.mxu0 %v680
  %708 = vmatprep.subr.bf16.mxu0 0
  %709 = vmatpush1.bf16.msra.mxu0 0
  %710 = vmatprep.subr.bf16.mxu0 0
  %711 = vmatpush1.bf16.msra.mxu0 0
  %712 = vmatprep.subr.bf16.mxu0 0
  %713 = vmatpush1.bf16.msra.mxu0 0
  %714 = vmatprep.mubr.bf16.mxu0 %v676
  %715 = vmatmul.mubr.bf16.gmra.mrb[0].mxu0 %v565
  %v716 = vpop.f32.mrb[0].mxu0
  %v717 = vadd.f32 %v597, %v716
  %v718 = vpop.f32.mrb[0].mxu0
  %v719 = vpop.f32.mrb[0].mxu0
  %v720 = vadd.f32 %v597, %v719
  %v721 = vpop.f32.mrb[0].mxu0
  %722 = vdwg.mxu0
  %v723 = vmax.f32 %v717, 0.0
  %v724 = vmax.f32 %v720, 0.0
  %v725 = vpack.c.bf16 %v724, %v723
  %v726 = vld [vmem:[%s7] sm:$0xf]
  %v727 = vld [vmem:[%s7 + $0x4] sm:$0xf]
  %v728 = vld [vmem:[%s7 + $0x8] sm:$0xf]
  %v729 = vld [vmem:[%s7 + $0xc] sm:$0xf]
  %v730 = vld [vmem:[%s7 + $0x10] sm:$0xf]
  %v731 = vld [vmem:[%s7 + $0x14] sm:$0xf]
  %v732 = vld [vmem:[%s7 + $0x18] sm:$0xf]
  %v733 = vld [vmem:[%s7 + $0x1c] sm:$0xf]
  %v734 = vld [vmem:[%s7 + $0x20] sm:$0xf]
  %v735 = vld [vmem:[%s7 + $0x24] sm:$0xf]
  %v736 = vld [vmem:[%s7 + $0x28] sm:$0xf]
  %v737 = vld [vmem:[%s7 + $0x2c] sm:$0xf]
  %v738 = vld [vmem:[%s7 + $0x30] sm:$0x3]
  %v739 = vld [vmem:[%s8] sm:$0x1]
  %v741 = vlaneseq
  %v742 = vshrl.u32 %v741, 7
  %v743 = vsub.s32 0, %v742
  %v744 = vrot.slane %v739, %v743
  %v759 = vunpack.c.l.b16 %v726
  %v760 = vunpack.c.l.b16 %v727
  %v761 = vunpack.c.l.b16 %v728
  %v762 = vunpack.c.l.b16 %v729
  %v763 = vunpack.c.l.b16 %v730
  %v764 = vunpack.c.l.b16 %v731
  %v765 = vunpack.c.l.b16 %v732
  %v766 = vunpack.c.l.b16 %v733
  %v767 = vunpack.c.l.b16 %v734
  %v768 = vunpack.c.l.b16 %v735
  %v769 = vunpack.c.l.b16 %v736
  %v770 = vunpack.c.l.b16 %v737
  %v771 = vunpack.c.l.b16 %v738
  %v772 = vpack.c.b16 %v760, %v759
  %v773 = vpack.c.b16 %v762, %v761
  %v774 = vpack.c.b16 %v764, %v763
  %v775 = vpack.c.b16 %v766, %v765
  %v776 = vpack.c.b16 %v768, %v767
  %v777 = vpack.c.b16 %v770, %v769
  %v778 = vpack.c.b16 %v771, %v771
  %vm785 = vcmask 818176
  %v787 = vsel %vm785, %v725, 0
  %v790 = vsel %vm123, %v778, 0
  %792 = vmatprep.subr.bf16.mxu0 0
  %793 = vmatpush1.bf16.msra.mxu0 %v772
  %794 = vmatprep.subr.bf16.mxu0 0
  %795 = vmatpush1.bf16.msra.mxu0 %v773
  %796 = vmatprep.subr.bf16.mxu0 0
  %797 = vmatpush1.bf16.msra.mxu0 %v774
  %798 = vmatprep.subr.bf16.mxu0 0
  %799 = vmatpush1.bf16.msra.mxu0 %v775
  %800 = vmatprep.subr.bf16.mxu0 0
  %801 = vmatpush1.bf16.msra.mxu0 %v776
  %802 = vmatprep.subr.bf16.mxu0 0
  %803 = vmatpush1.bf16.msra.mxu0 %v777
  %804 = vmatprep.subr.bf16.mxu0 0
  %805 = vmatpush1.bf16.msra.mxu0 %v790
  %806 = vmatprep.subr.bf16.mxu0 0
  %807 = vmatpush1.bf16.msra.mxu0 0
  %808 = vmatprep.subr.bf16.mxu0 0
  %809 = vmatpush1.bf16.msra.mxu0 0
  %810 = vmatprep.subr.bf16.mxu0 0
  %811 = vmatpush1.bf16.msra.mxu0 0
  %812 = vmatprep.subr.bf16.mxu0 0
  %813 = vmatpush1.bf16.msra.mxu0 0
  %814 = vmatprep.subr.bf16.mxu0 0
  %815 = vmatpush1.bf16.msra.mxu0 0
  %816 = vmatprep.subr.bf16.mxu0 0
  %817 = vmatpush1.bf16.msra.mxu0 0
  %818 = vmatprep.subr.bf16.mxu0 0
  %819 = vmatpush1.bf16.msra.mxu0 0
  %820 = vmatprep.subr.bf16.mxu0 0
  %821 = vmatpush1.bf16.msra.mxu0 0
  %822 = vmatprep.subr.bf16.mxu0 0
  %823 = vmatpush1.bf16.msra.mxu0 0
  %824 = vmatprep.mubr.bf16.mxu0 0
  %825 = vmatmul.mubr.bf16.gmra.mrb[0].mxu0 %v787
  %v826 = vpop.f32.mrb[0].mxu0
  %v827 = vadd.f32 %v744, %v826
  %v828 = vpop.f32.mrb[0].mxu0
  %v829 = vpop.f32.mrb[0].mxu0
  %v830 = vadd.f32 %v744, %v829
  %v831 = vpop.f32.mrb[0].mxu0
  %832 = vdwg.mxu0
  %v833 = vmax.f32 %v827, 0.0
  %v834 = vmax.f32 %v830, 0.0
  %v835 = vpack.c.bf16 %v834, %v833
  %v836 = vld [vmem:[%s9] sm:$0xf]
  %v837 = vld [vmem:[%s9 + $0x4] sm:$0xf]
  %v838 = vld [vmem:[%s9 + $0x8] sm:$0xf]
  %v839 = vld [vmem:[%s9 + $0xc] sm:$0xf]
  %v840 = vld [vmem:[%s9 + $0x10] sm:$0xf]
  %v841 = vld [vmem:[%s9 + $0x14] sm:$0xf]
  %v842 = vld [vmem:[%s9 + $0x18] sm:$0x1]
  %v843 = vld [vmem:[%s10] sm:$0x1]
  %v845 = vlaneseq
  %v846 = vshrl.u32 %v845, 7
  %v847 = vsub.s32 0, %v846
  %v848 = vrot.slane %v843, %v847
  %v857 = vunpack.c.l.b16 %v836
  %v858 = vunpack.c.l.b16 %v837
  %v859 = vunpack.c.l.b16 %v838
  %v860 = vunpack.c.l.b16 %v839
  %v861 = vunpack.c.l.b16 %v840
  %v862 = vunpack.c.l.b16 %v841
  %v863 = vunpack.c.l.b16 %v842
  %v864 = vpack.c.b16 %v858, %v857
  %v865 = vpack.c.b16 %v860, %v859
  %v866 = vpack.c.b16 %v862, %v861
  %v867 = vpack.c.b16 %v863, %v863
  %vm871 = vcmask 408576
  %v873 = vsel %vm871, %v835, 0
  %vm875 = vcmask 1040384
  %v877 = vsel %vm875, %v867, 0
  %879 = vmatprep.subr.bf16.mxu0 0
  %880 = vmatpush1.bf16.msra.mxu0 %v864
  %881 = vmatprep.subr.bf16.mxu0 0
  %882 = vmatpush1.bf16.msra.mxu0 %v865
  %883 = vmatprep.subr.bf16.mxu0 0
  %884 = vmatpush1.bf16.msra.mxu0 %v866
  %885 = vmatprep.subr.bf16.mxu0 0
  %886 = vmatpush1.bf16.msra.mxu0 %v877
  %887 = vmatprep.subr.bf16.mxu0 0
  %888 = vmatpush1.bf16.msra.mxu0 0
  %889 = vmatprep.subr.bf16.mxu0 0
  %890 = vmatpush1.bf16.msra.mxu0 0
  %891 = vmatprep.subr.bf16.mxu0 0
  %892 = vmatpush1.bf16.msra.mxu0 0
  %893 = vmatprep.subr.bf16.mxu0 0
  %894 = vmatpush1.bf16.msra.mxu0 0
  %895 = vmatprep.subr.bf16.mxu0 0
  %896 = vmatpush1.bf16.msra.mxu0 0
  %897 = vmatprep.subr.bf16.mxu0 0
  %898 = vmatpush1.bf16.msra.mxu0 0
  %899 = vmatprep.subr.bf16.mxu0 0
  %900 = vmatpush1.bf16.msra.mxu0 0
  %901 = vmatprep.subr.bf16.mxu0 0
  %902 = vmatpush1.bf16.msra.mxu0 0
  %903 = vmatprep.subr.bf16.mxu0 0
  %904 = vmatpush1.bf16.msra.mxu0 0
  %905 = vmatprep.subr.bf16.mxu0 0
  %906 = vmatpush1.bf16.msra.mxu0 0
  %907 = vmatprep.subr.bf16.mxu0 0
  %908 = vmatpush1.bf16.msra.mxu0 0
  %909 = vmatprep.subr.bf16.mxu0 0
  %910 = vmatpush1.bf16.msra.mxu0 0
  %911 = vmatprep.mubr.bf16.mxu0 0
  %912 = vmatmul.mubr.bf16.gmra.mrb[0].mxu0 %v873
  %v913 = vpop.f32.mrb[0].mxu0
  %v914 = vadd.f32 %v848, %v913
  %v915 = vpop.f32.mrb[0].mxu0
  %v916 = vpop.f32.mrb[0].mxu0
  %v917 = vadd.f32 %v848, %v916
  %v918 = vpop.f32.mrb[0].mxu0
  %919 = vdwg.mxu0
  %v920 = vpack.c.bf16 %v917, %v914
  %v921 = vld [vmem:[%s11] sm:$0xf]
  %v922 = vld [vmem:[%s12] sm:$0x1]
  %v924 = vlaneseq
  %v925 = vshrl.u32 %v924, 7
  %v926 = vsub.s32 0, %v925
  %v927 = vrot.slane %v922, %v926
  %vm929 = vcmask 64512
  %v931 = vsel %vm929, %v920, 0
  %v934 = vsel %vm678, %v921, 0
  %936 = vmatprep.subr.bf16.mxu0 0
  %937 = vmatpush1.bf16.msra.mxu0 %v934
  %938 = vmatprep.subr.bf16.mxu0 0
  %939 = vmatpush1.bf16.msra.mxu0 0
  %940 = vmatprep.subr.bf16.mxu0 0
  %941 = vmatpush1.bf16.msra.mxu0 0
  %942 = vmatprep.subr.bf16.mxu0 0
  %943 = vmatpush1.bf16.msra.mxu0 0
  %944 = vmatprep.subr.bf16.mxu0 0
  %945 = vmatpush1.bf16.msra.mxu0 0
  %946 = vmatprep.subr.bf16.mxu0 0
  %947 = vmatpush1.bf16.msra.mxu0 0
  %948 = vmatprep.subr.bf16.mxu0 0
  %949 = vmatpush1.bf16.msra.mxu0 0
  %950 = vmatprep.subr.bf16.mxu0 0
  %951 = vmatpush1.bf16.msra.mxu0 0
  %952 = vmatprep.subr.bf16.mxu0 0
  %953 = vmatpush1.bf16.msra.mxu0 0
  %954 = vmatprep.subr.bf16.mxu0 0
  %955 = vmatpush1.bf16.msra.mxu0 0
  %956 = vmatprep.subr.bf16.mxu0 0
  %957 = vmatpush1.bf16.msra.mxu0 0
  %958 = vmatprep.subr.bf16.mxu0 0
  %959 = vmatpush1.bf16.msra.mxu0 0
  %960 = vmatprep.subr.bf16.mxu0 0
  %961 = vmatpush1.bf16.msra.mxu0 0
  %962 = vmatprep.subr.bf16.mxu0 0
  %963 = vmatpush1.bf16.msra.mxu0 0
  %964 = vmatprep.subr.bf16.mxu0 0
  %965 = vmatpush1.bf16.msra.mxu0 0
  %966 = vmatprep.subr.bf16.mxu0 0
  %967 = vmatpush1.bf16.msra.mxu0 0
  %968 = vmatprep.mubr.bf16.mxu0 0
  %969 = vmatmul.mubr.bf16.gmra.mrb[0].mxu0 %v931
  %v970 = vpop.f32.mrb[0].mxu0
  %v971 = vadd.f32 %v927, %v970
  %v972 = vpop.f32.mrb[0].mxu0
  %v973 = vpop.f32.mrb[0].mxu0
  %v974 = vadd.f32 %v927, %v973
  %v975 = vpop.f32.mrb[0].mxu0
  %976 = vdwg.mxu0
  %v977 = vpack.c.bf16 %v974, %v971
  %v979 = vsel %vm119, %v977, 0
  %981 = vmatprep.subr.bf16.mxu0 %v105
  %982 = vmatpush1.bf16.msra.mxu0 %v104
  %983 = vmatprep.subr.bf16.mxu0 %v108
  %984 = vmatpush1.bf16.msra.mxu0 %v107
  %985 = vmatprep.subr.bf16.mxu0 %v128
  %986 = vmatpush1.bf16.msra.mxu0 %v125
  %987 = vmatprep.subr.bf16.mxu0 0
  %988 = vmatpush1.bf16.msra.mxu0 0
  %989 = vmatprep.subr.bf16.mxu0 0
  %990 = vmatpush1.bf16.msra.mxu0 0
  %991 = vmatprep.subr.bf16.mxu0 0
  %992 = vmatpush1.bf16.msra.mxu0 0
  %993 = vmatprep.subr.bf16.mxu0 0
  %994 = vmatpush1.bf16.msra.mxu0 0
  %995 = vmatprep.subr.bf16.mxu0 0
  %996 = vmatpush1.bf16.msra.mxu0 0
  %997 = vmatprep.subr.bf16.mxu0 0
  %998 = vmatpush1.bf16.msra.mxu0 0
  %999 = vmatprep.subr.bf16.mxu0 0
  %1000 = vmatpush1.bf16.msra.mxu0 0
  %1001 = vmatprep.subr.bf16.mxu0 0
  %1002 = vmatpush1.bf16.msra.mxu0 0
  %1003 = vmatprep.subr.bf16.mxu0 0
  %1004 = vmatpush1.bf16.msra.mxu0 0
  %1005 = vmatprep.subr.bf16.mxu0 0
  %1006 = vmatpush1.bf16.msra.mxu0 0
  %1007 = vmatprep.subr.bf16.mxu0 0
  %1008 = vmatpush1.bf16.msra.mxu0 0
  %1009 = vmatprep.subr.bf16.mxu0 0
  %1010 = vmatpush1.bf16.msra.mxu0 0
  %1011 = vmatprep.subr.bf16.mxu0 0
  %1012 = vmatpush1.bf16.msra.mxu0 0
  %1013 = vmatprep.mubr.bf16.mxu0 0
  %1014 = vmatmul.mubr.bf16.gmra.mrb[0].mxu0 %v979
  %v1015 = vpop.f32.mrb[0].mxu0
  %v1016 = vadd.f32 %v62, %v1015
  %v1017 = vpop.f32.mrb[0].mxu0
  %v1018 = vadd.f32 %v66, %v1017
  %v1019 = vpop.f32.mrb[0].mxu0
  %v1020 = vadd.f32 %v62, %v1019
  %v1021 = vpop.f32.mrb[0].mxu0
  %v1022 = vadd.f32 %v66, %v1021
  %1023 = vdwg.mxu0
  %1024 = vmatprep.subr.bf16.mxu0 0
  %1025 = vmatpush1.bf16.msra.mxu0 %v106
  %1026 = vmatprep.subr.bf16.mxu0 0
  %1027 = vmatpush1.bf16.msra.mxu0 %v109
  %1028 = vmatprep.subr.bf16.mxu0 0
  %1029 = vmatpush1.bf16.msra.mxu0 %v131
  %1030 = vmatprep.subr.bf16.mxu0 0
  %1031 = vmatpush1.bf16.msra.mxu0 0
  %1032 = vmatprep.subr.bf16.mxu0 0
  %1033 = vmatpush1.bf16.msra.mxu0 0
  %1034 = vmatprep.subr.bf16.mxu0 0
  %1035 = vmatpush1.bf16.msra.mxu0 0
  %1036 = vmatprep.subr.bf16.mxu0 0
  %1037 = vmatpush1.bf16.msra.mxu0 0
  %1038 = vmatprep.subr.bf16.mxu0 0
  %1039 = vmatpush1.bf16.msra.mxu0 0
  %1040 = vmatprep.subr.bf16.mxu0 0
  %1041 = vmatpush1.bf16.msra.mxu0 0
  %1042 = vmatprep.subr.bf16.mxu0 0
  %1043 = vmatpush1.bf16.msra.mxu0 0
  %1044 = vmatprep.subr.bf16.mxu0 0
  %1045 = vmatpush1.bf16.msra.mxu0 0
  %1046 = vmatprep.subr.bf16.mxu0 0
  %1047 = vmatpush1.bf16.msra.mxu0 0
  %1048 = vmatprep.subr.bf16.mxu0 0
  %1049 = vmatpush1.bf16.msra.mxu0 0
  %1050 = vmatprep.subr.bf16.mxu0 0
  %1051 = vmatpush1.bf16.msra.mxu0 0
  %1052 = vmatprep.subr.bf16.mxu0 0
  %1053 = vmatpush1.bf16.msra.mxu0 0
  %1054 = vmatprep.subr.bf16.mxu0 0
  %1055 = vmatpush1.bf16.msra.mxu0 0
  %1056 = vmatprep.mubr.bf16.mxu0 0
  %1057 = vmatmul.mubr.bf16.gmra.mrb[0].mxu0 %v979
  %v1058 = vpop.f32.mrb[0].mxu0
  %v1059 = vadd.f32 %v70, %v1058
  %v1060 = vpop.f32.mrb[0].mxu0
  %v1061 = vpop.f32.mrb[0].mxu0
  %v1062 = vadd.f32 %v70, %v1061
  %v1063 = vpop.f32.mrb[0].mxu0
  %1064 = vdwg.mxu0
  %v1065 = vmax.f32 %v1016, 0.0
  %v1066 = vmax.f32 %v1018, 0.0
  %v1067 = vmax.f32 %v1059, 0.0
  %v1068 = vmax.f32 %v1020, 0.0
  %v1069 = vmax.f32 %v1022, 0.0
  %v1070 = vmax.f32 %v1062, 0.0
  %v1071 = vpack.c.bf16 %v1068, %v1065
  %v1072 = vpack.c.bf16 %v1069, %v1066
  %v1073 = vpack.c.bf16 %v1070, %v1067
  %v1075 = vsel %vm464, %v1073, 0
  %1077 = vmatprep.subr.bf16.mxu0 %v391
  %1078 = vmatpush1.bf16.msra.mxu0 %v390
  %1079 = vmatprep.subr.bf16.mxu0 %v393
  %1080 = vmatpush1.bf16.msra.mxu0 %v392
  %1081 = vmatprep.subr.bf16.mxu0 %v395
  %1082 = vmatpush1.bf16.msra.mxu0 %v394
  %1083 = vmatprep.subr.bf16.mxu0 %v397
  %1084 = vmatpush1.bf16.msra.mxu0 %v396
  %1085 = vmatprep.subr.bf16.mxu0 %v399
  %1086 = vmatpush1.bf16.msra.mxu0 %v398
  %1087 = vmatprep.subr.bf16.mxu0 %v401
  %1088 = vmatpush1.bf16.msra.mxu0 %v400
  %1089 = vmatprep.subr.bf16.mxu0 %v403
  %1090 = vmatpush1.bf16.msra.mxu0 %v402
  %1091 = vmatprep.subr.bf16.mxu0 %v405
  %1092 = vmatpush1.bf16.msra.mxu0 %v404
  %1093 = vmatprep.subr.bf16.mxu0 %v407
  %1094 = vmatpush1.bf16.msra.mxu0 %v406
  %1095 = vmatprep.subr.bf16.mxu0 %v409
  %1096 = vmatpush1.bf16.msra.mxu0 %v408
  %1097 = vmatprep.subr.bf16.mxu0 %v411
  %1098 = vmatpush1.bf16.msra.mxu0 %v410
  %1099 = vmatprep.subr.bf16.mxu0 %v413
  %1100 = vmatpush1.bf16.msra.mxu0 %v412
  %1101 = vmatprep.subr.bf16.mxu0 %v415
  %1102 = vmatpush1.bf16.msra.mxu0 %v414
  %1103 = vmatprep.subr.bf16.mxu0 %v417
  %1104 = vmatpush1.bf16.msra.mxu0 %v416
  %1105 = vmatprep.subr.bf16.mxu0 %v419
  %1106 = vmatpush1.bf16.msra.mxu0 %v418
  %1107 = vmatprep.subr.bf16.mxu0 %v421
  %1108 = vmatpush1.bf16.msra.mxu0 %v420
  %1109 = vmatprep.mubr.bf16.mxu0 %v1072
  %1110 = vmatmul.mubr.bf16.gmra.mrb[0].mxu0 %v1071
  %v1111 = vpop.f32.mrb[0].mxu0
  %v1112 = vadd.f32 %v269, %v1111
  %v1113 = vpop.f32.mrb[0].mxu0
  %v1114 = vadd.f32 %v273, %v1113
  %v1115 = vpop.f32.mrb[0].mxu0
  %v1116 = vadd.f32 %v269, %v1115
  %v1117 = vpop.f32.mrb[0].mxu0
  %v1118 = vadd.f32 %v273, %v1117
  %1119 = vdwg.mxu0
  %1120 = vmatprep.subr.bf16.mxu0 %v423
  %1121 = vmatpush1.bf16.msra.mxu0 %v422
  %1122 = vmatprep.subr.bf16.mxu0 %v425
  %1123 = vmatpush1.bf16.msra.mxu0 %v424
  %1124 = vmatprep.subr.bf16.mxu0 %v473
  %1125 = vmatpush1.bf16.msra.mxu0 %v470
  %1126 = vmatprep.subr.bf16.mxu0 0
  %1127 = vmatpush1.bf16.msra.mxu0 0
  %1128 = vmatprep.subr.bf16.mxu0 0
  %1129 = vmatpush1.bf16.msra.mxu0 0
  %1130 = vmatprep.subr.bf16.mxu0 0
  %1131 = vmatpush1.bf16.msra.mxu0 0
  %1132 = vmatprep.subr.bf16.mxu0 0
  %1133 = vmatpush1.bf16.msra.mxu0 0
  %1134 = vmatprep.subr.bf16.mxu0 0
  %1135 = vmatpush1.bf16.msra.mxu0 0
  %1136 = vmatprep.subr.bf16.mxu0 0
  %1137 = vmatpush1.bf16.msra.mxu0 0
  %1138 = vmatprep.subr.bf16.mxu0 0
  %1139 = vmatpush1.bf16.msra.mxu0 0
  %1140 = vmatprep.subr.bf16.mxu0 0
  %1141 = vmatpush1.bf16.msra.mxu0 0
  %1142 = vmatprep.subr.bf16.mxu0 0
  %1143 = vmatpush1.bf16.msra.mxu0 0
  %1144 = vmatprep.subr.bf16.mxu0 0
  %1145 = vmatpush1.bf16.msra.mxu0 0
  %1146 = vmatprep.subr.bf16.mxu0 0
  %1147 = vmatpush1.bf16.msra.mxu0 0
  %1148 = vmatprep.subr.bf16.mxu0 0
  %1149 = vmatpush1.bf16.msra.mxu0 0
  %1150 = vmatprep.subr.bf16.mxu0 0
  %1151 = vmatpush1.bf16.msra.mxu0 0
  %1152 = vmatprep.mubr.bf16.mxu0 0
  %1153 = vmatmul.mubr.bf16.gmra.mrb[0].mxu0 %v1075
  %v1154 = vpop.f32.mrb[0].mxu0
  %v1155 = vadd.f32 %v1112, %v1154
  %v1156 = vpop.f32.mrb[0].mxu0
  %v1157 = vadd.f32 %v1114, %v1156
  %v1158 = vpop.f32.mrb[0].mxu0
  %v1159 = vadd.f32 %v1116, %v1158
  %v1160 = vpop.f32.mrb[0].mxu0
  %v1161 = vadd.f32 %v1118, %v1160
  %1162 = vdwg.mxu0
  %v1163 = vmax.f32 %v1155, 0.0
  %v1164 = vmax.f32 %v1157, 0.0
  %v1165 = vmax.f32 %v1159, 0.0
  %v1166 = vmax.f32 %v1161, 0.0
  %v1167 = vpack.c.bf16 %v1165, %v1163
  %v1168 = vpack.c.bf16 %v1166, %v1164
  %v1170 = vsel %vm674, %v1168, 0
  %1172 = vmatprep.subr.bf16.mxu0 0
  %1173 = vmatpush1.bf16.msra.mxu0 %v649
  %1174 = vmatprep.subr.bf16.mxu0 0
  %1175 = vmatpush1.bf16.msra.mxu0 %v650
  %1176 = vmatprep.subr.bf16.mxu0 0
  %1177 = vmatpush1.bf16.msra.mxu0 %v651
  %1178 = vmatprep.subr.bf16.mxu0 0
  %1179 = vmatpush1.bf16.msra.mxu0 %v652
  %1180 = vmatprep.subr.bf16.mxu0 0
  %1181 = vmatpush1.bf16.msra.mxu0 %v653
  %1182 = vmatprep.subr.bf16.mxu0 0
  %1183 = vmatpush1.bf16.msra.mxu0 %v654
  %1184 = vmatprep.subr.bf16.mxu0 0
  %1185 = vmatpush1.bf16.msra.mxu0 %v655
  %1186 = vmatprep.subr.bf16.mxu0 0
  %1187 = vmatpush1.bf16.msra.mxu0 %v656
  %1188 = vmatprep.subr.bf16.mxu0 0
  %1189 = vmatpush1.bf16.msra.mxu0 %v657
  %1190 = vmatprep.subr.bf16.mxu0 0
  %1191 = vmatpush1.bf16.msra.mxu0 %v658
  %1192 = vmatprep.subr.bf16.mxu0 0
  %1193 = vmatpush1.bf16.msra.mxu0 %v659
  %1194 = vmatprep.subr.bf16.mxu0 0
  %1195 = vmatpush1.bf16.msra.mxu0 %v660
  %1196 = vmatprep.subr.bf16.mxu0 0
  %1197 = vmatpush1.bf16.msra.mxu0 %v680
  %1198 = vmatprep.subr.bf16.mxu0 0
  %1199 = vmatpush1.bf16.msra.mxu0 0
  %1200 = vmatprep.subr.bf16.mxu0 0
  %1201 = vmatpush1.bf16.msra.mxu0 0
  %1202 = vmatprep.subr.bf16.mxu0 0
  %1203 = vmatpush1.bf16.msra.mxu0 0
  %1204 = vmatprep.mubr.bf16.mxu0 %v1170
  %1205 = vmatmul.mubr.bf16.gmra.mrb[0].mxu0 %v1167
  %v1206 = vpop.f32.mrb[0].mxu0
  %v1207 = vadd.f32 %v597, %v1206
  %v1208 = vpop.f32.mrb[0].mxu0
  %v1209 = vpop.f32.mrb[0].mxu0
  %v1210 = vadd.f32 %v597, %v1209
  %v1211 = vpop.f32.mrb[0].mxu0
  %1212 = vdwg.mxu0
  %v1213 = vmax.f32 %v1207, 0.0
  %v1214 = vmax.f32 %v1210, 0.0
  %v1215 = vpack.c.bf16 %v1214, %v1213
  %v1217 = vsel %vm785, %v1215, 0
  %1219 = vmatprep.subr.bf16.mxu0 0
  %1220 = vmatpush1.bf16.msra.mxu0 %v772
  %1221 = vmatprep.subr.bf16.mxu0 0
  %1222 = vmatpush1.bf16.msra.mxu0 %v773
  %1223 = vmatprep.subr.bf16.mxu0 0
  %1224 = vmatpush1.bf16.msra.mxu0 %v774
  %1225 = vmatprep.subr.bf16.mxu0 0
  %1226 = vmatpush1.bf16.msra.mxu0 %v775
  %1227 = vmatprep.subr.bf16.mxu0 0
  %1228 = vmatpush1.bf16.msra.mxu0 %v776
  %1229 = vmatprep.subr.bf16.mxu0 0
  %1230 = vmatpush1.bf16.msra.mxu0 %v777
  %1231 = vmatprep.subr.bf16.mxu0 0
  %1232 = vmatpush1.bf16.msra.mxu0 %v790
  %1233 = vmatprep.subr.bf16.mxu0 0
  %1234 = vmatpush1.bf16.msra.mxu0 0
  %1235 = vmatprep.subr.bf16.mxu0 0
  %1236 = vmatpush1.bf16.msra.mxu0 0
  %1237 = vmatprep.subr.bf16.mxu0 0
  %1238 = vmatpush1.bf16.msra.mxu0 0
  %1239 = vmatprep.subr.bf16.mxu0 0
  %1240 = vmatpush1.bf16.msra.mxu0 0
  %1241 = vmatprep.subr.bf16.mxu0 0
  %1242 = vmatpush1.bf16.msra.mxu0 0
  %1243 = vmatprep.subr.bf16.mxu0 0
  %1244 = vmatpush1.bf16.msra.mxu0 0
  %1245 = vmatprep.subr.bf16.mxu0 0
  %1246 = vmatpush1.bf16.msra.mxu0 0
  %1247 = vmatprep.subr.bf16.mxu0 0
  %1248 = vmatpush1.bf16.msra.mxu0 0
  %1249 = vmatprep.subr.bf16.mxu0 0
  %1250 = vmatpush1.bf16.msra.mxu0 0
  %1251 = vmatprep.mubr.bf16.mxu0 0
  %1252 = vmatmul.mubr.bf16.gmra.mrb[0].mxu0 %v1217
  %v1253 = vpop.f32.mrb[0].mxu0
  %v1254 = vadd.f32 %v744, %v1253
  %v1255 = vpop.f32.mrb[0].mxu0
  %v1256 = vpop.f32.mrb[0].mxu0
  %v1257 = vadd.f32 %v744, %v1256
  %v1258 = vpop.f32.mrb[0].mxu0
  %1259 = vdwg.mxu0
  %v1260 = vmax.f32 %v1254, 0.0
  %v1261 = vmax.f32 %v1257, 0.0
  %v1262 = vpack.c.bf16 %v1261, %v1260
  %v1264 = vsel %vm871, %v1262, 0
  %1266 = vmatprep.subr.bf16.mxu0 0
  %1267 = vmatpush1.bf16.msra.mxu0 %v864
  %1268 = vmatprep.subr.bf16.mxu0 0
  %1269 = vmatpush1.bf16.msra.mxu0 %v865
  %1270 = vmatprep.subr.bf16.mxu0 0
  %1271 = vmatpush1.bf16.msra.mxu0 %v866
  %1272 = vmatprep.subr.bf16.mxu0 0
  %1273 = vmatpush1.bf16.msra.mxu0 %v877
  %1274 = vmatprep.subr.bf16.mxu0 0
  %1275 = vmatpush1.bf16.msra.mxu0 0
  %1276 = vmatprep.subr.bf16.mxu0 0
  %1277 = vmatpush1.bf16.msra.mxu0 0
  %1278 = vmatprep.subr.bf16.mxu0 0
  %1279 = vmatpush1.bf16.msra.mxu0 0
  %1280 = vmatprep.subr.bf16.mxu0 0
  %1281 = vmatpush1.bf16.msra.mxu0 0
  %1282 = vmatprep.subr.bf16.mxu0 0
  %1283 = vmatpush1.bf16.msra.mxu0 0
  %1284 = vmatprep.subr.bf16.mxu0 0
  %1285 = vmatpush1.bf16.msra.mxu0 0
  %1286 = vmatprep.subr.bf16.mxu0 0
  %1287 = vmatpush1.bf16.msra.mxu0 0
  %1288 = vmatprep.subr.bf16.mxu0 0
  %1289 = vmatpush1.bf16.msra.mxu0 0
  %1290 = vmatprep.subr.bf16.mxu0 0
  %1291 = vmatpush1.bf16.msra.mxu0 0
  %1292 = vmatprep.subr.bf16.mxu0 0
  %1293 = vmatpush1.bf16.msra.mxu0 0
  %1294 = vmatprep.subr.bf16.mxu0 0
  %1295 = vmatpush1.bf16.msra.mxu0 0
  %1296 = vmatprep.subr.bf16.mxu0 0
  %1297 = vmatpush1.bf16.msra.mxu0 0
  %1298 = vmatprep.mubr.bf16.mxu0 0
  %1299 = vmatmul.mubr.bf16.gmra.mrb[0].mxu0 %v1264
  %v1300 = vpop.f32.mrb[0].mxu0
  %v1301 = vadd.f32 %v848, %v1300
  %v1302 = vpop.f32.mrb[0].mxu0
  %v1303 = vpop.f32.mrb[0].mxu0
  %v1304 = vadd.f32 %v848, %v1303
  %v1305 = vpop.f32.mrb[0].mxu0
  %1306 = vdwg.mxu0
  %1307 = vst.msk [vmem:[%s13] sm:$0xff] %vm929, %v1301
  %1308 = vst.msk [vmem:[%s13 + $0x8] sm:$0xff] %vm929, %v1304
  // Predicated region
  $region54: #{tpu_custom_call.1} parent=0 // pred_check
    _
  $region55: #{tpu_custom_call.1} parent=0 // pred_check_branch
    %1310 = sbr.rel (0) target = $region57
  $region56: #{tpu_custom_call.1} parent=0 // pred_region
    _
  $region57: #{tpu_custom_call.1} parent=0 // pred_fallthru
    _
  // Predicated region
  $region58: #{tpu_custom_call.1} parent=0 // pred_check
    _
  $region59: #{tpu_custom_call.1} parent=0 // pred_check_branch
    %1312 = sbr.rel (0) target = $region61
  $region60: #{tpu_custom_call.1} parent=0 // pred_region
    _
  $region61: #{tpu_custom_call.1} parent=0 // pred_fallthru
    _

</llo_original>
